<compile_context>
chip_gen: v7x
topology: tpu7x:2x2x1
jax: 0.10.0
libtpu: 0.0.40
codegen_flags: <defaults>
</compile_context>

<pallas_src>
import functools

import jax
import jax.numpy as jnp
from jax.experimental import pallas as pl
from jax.experimental.pallas import tpu as pltpu


# ----------------------------------------------------------------------------
# In-kernel helpers
# ----------------------------------------------------------------------------
def _win_max_w(a, upper_mask, shift):
    """a: (rows, W, C), already constant on aligned `shift`-wide windows along
    W (trivially true for shift == 1).  Returns the max over aligned windows of
    width 2*shift, replicated across each window.  `upper_mask` is a (1, W, 1)
    bool mask, True on the upper half of each 2*shift window.  Wrap-around
    values of the rolls are provably never selected when W % (2*shift) == 0."""
    m = jnp.maximum(a, jnp.roll(a, -shift, axis=1))     # m[w]=max(a[w], a[w+shift])
    return jnp.where(upper_mask, jnp.roll(m, shift, axis=1), m)


def msc_kernel(x_ref, w_ref, b_ref, o_ref, *, mode):
    # x_ref: (1, TH, TW, C)  w_ref: (3C, C) = [w0; w1; w2] (bf16)
    # b_ref: (1, C) f32      o_ref: (1, TH, TW, C)
    f32 = jnp.float32
    x = x_ref[0]                                    # (TH, TW, C), input dtype
    TH, TW, C = x.shape
    cdt = w_ref.dtype                               # matmul operand dtype

    # Parity masks for the W-direction window maxima, built once from a small
    # (1, TW, 1) iota (broadcast inside jnp.where) instead of full-size iotas.
    wi = jax.lax.broadcasted_iota(jnp.int32, (1, TW, 1), 1)
    odd_col = (wi & 1) == 1                         # upper half of 2-windows
    hi_pair = (wi & 3) >= 2                         # upper half of 4-windows

    # ---- hierarchical 2x2 / 4x4 max pooling --------------------------------
    # H direction: free leading-dim reshapes.  W direction: roll + select.
    # u2 / u4 stay at TH/2 / TH/4 rows with the window max replicated along W.
    xr = x.reshape(TH // 2, 2, TW, C)
    row2 = jnp.maximum(xr[:, 0], xr[:, 1])          # 2-row max      (TH/2,TW,C)
    u2 = _win_max_w(row2, odd_col, 1)               # 2x2 block max  (TH/2,TW,C)
    ur = u2.reshape(TH // 4, 2, TW, C)
    row4 = jnp.maximum(ur[:, 0], ur[:, 1])          # 4-row, 2-col max
    u4 = _win_max_w(row4, hi_pair, 2)               # 4x4 block max  (TH/4,TW,C)

    xc = x.astype(cdt)
    u2c = u2.astype(cdt)
    u4c = u4.astype(cdt)
    b = b_ref[...].astype(f32)                      # (1, C)

    # ---- 1x1 conv over the (virtual) channel concat ------------------------
    if mode == "concat3":
        # 3C <= 128: one MXU pass per 128 rows -> materialize the concat once
        # and run a single matmul against the stacked weight.
        u2f = jnp.broadcast_to(u2c.reshape(TH // 2, 1, TW, C),
                               (TH // 2, 2, TW, C)).reshape(TH, TW, C)
        u4f = jnp.broadcast_to(u4c.reshape(TH // 4, 1, TW, C),
                               (TH // 4, 4, TW, C)).reshape(TH, TW, C)
        cat = jnp.concatenate([xc, u2f, u4f], axis=-1)          # (TH, TW, 3C)
        y = jnp.dot(cat.reshape(TH * TW, 3 * C), w_ref[...],
                    preferred_element_type=f32)
        out = jnp.maximum(y + b, 0.0).reshape(TH, TW, C)
    else:
        # x branch at full resolution.
        y0 = jnp.dot(xc.reshape(TH * TW, C), w_ref[0:C, :],
                     preferred_element_type=f32)
        if mode == "concat2":
            # 2C <= 128 < 3C: merge both pooled branches into one matmul
            # running on TH/2 rows.
            u4r = jnp.broadcast_to(u4c.reshape(TH // 4, 1, TW, C),
                                   (TH // 4, 2, TW, C)).reshape(TH // 2, TW, C)
            cat2 = jnp.concatenate([u2c, u4r], axis=-1)         # (TH/2,TW,2C)
            y12 = jnp.dot(cat2.reshape((TH // 2) * TW, 2 * C),
                          w_ref[C:3 * C, :], preferred_element_type=f32) + b
        else:  # "split": 2C > 128
            # Fold y2 into y1 at TH/2 resolution before expanding; bias added
            # once at the lowest resolution (TH/4 rows).
            y2 = jnp.dot(u4c.reshape((TH // 4) * TW, C), w_ref[2 * C:3 * C, :],
                         preferred_element_type=f32) + b
            y2 = jnp.broadcast_to(
                y2.reshape(TH // 4, 1, TW, C),
                (TH // 4, 2, TW, C)).reshape((TH // 2) * TW, C)
            y12 = jnp.dot(u2c.reshape((TH // 2) * TW, C), w_ref[C:2 * C, :],
                          preferred_element_type=f32) + y2
        # Nearest-neighbour H upsample of the pooled contribution = implicit
        # broadcast of y12 over each row pair; fused with the ReLU.
        out = jnp.maximum(y0.reshape(TH // 2, 2, TW, C)
                          + y12.reshape(TH // 2, 1, TW, C), 0.0)
        out = out.reshape(TH, TW, C)

    o_ref[0] = out.astype(o_ref.dtype)


# ----------------------------------------------------------------------------
# Wrapper: generation-aware tiling / VMEM budget
# ----------------------------------------------------------------------------
def _vmem_capacity_bytes():
    try:
        info = pltpu.get_tpu_info()
        cap = getattr(info, "vmem_capacity_bytes", None)
        if cap:
            return int(cap)
    except Exception:
        pass
    return 64 * 1024 * 1024          # conservative default (v7x per-TC VMEM)


def _pick_tiles(N, H, W, C, in_bytes, budget):
    """Largest pooling-aligned (tile_h, tile_w) whose estimated VMEM footprint
    fits `budget`, preferring an un-tiled W axis and >= 2 total grid steps."""
    max_in_block = 8 * 1024 * 1024   # cap on the (double-buffered) input block

    def fits(th, tw):
        tile = th * tw * C
        if tile * in_bytes > max_in_block:
            return False
        est = (tile * (4 * in_bytes         # double-buffered in + out blocks
                       + 3 * 2              # bf16 activation temporaries
                       + 3 * 4)             # f32 matmul outputs / pre-ReLU
               + 4 * C * (3 * C * 2 + 4))   # weight (bf16) + bias buffers
        return est <= budget

    hs = [d for d in range(4, H + 1, 4) if H % d == 0]           # ascending
    ws = [W] + [d for d in range(W - 8, 7, -8) if W % d == 0]    # full W first
    for tw in ws:
        ok = [th for th in hs if fits(th, tw)]
        if not ok:
            continue
        best = max(ok)
        if N * (H // best) * (W // tw) < 2:          # keep both v7x TCs busy
            two = [th for th in ok if N * (H // th) * (W // tw) >= 2]
            if two:
                best = max(two)
        return best, tw
    return hs[0], ws[-1]


def msc_forward_nhwc(x, w, b, *, tile_h=None, tile_w=None, force_split=False,
                     weight_dtype=jnp.bfloat16, vmem_limit_bytes=None):
    """MSC forward, NHWC (production entry point).

    x: (N, H, W, C) with H % 4 == 0, W % 4 == 0.
    w: (3C, C)  -- PyTorch Conv2d(3C, C, 1) weight (C, 3C, 1, 1) reshaped to
                   (C, 3C) and transposed; channel blocks ordered
                   [x | pool2-up | pool4-up] to match torch.cat([x, x1, x2], 1).
    b: (C,)
    force_split=True keeps the always-supported 3-way split matmul path
    (used as a fallback if lane-dim concatenation is unavailable).
    """
    N, H, W, C = x.shape
    assert H % 4 == 0 and W % 4 == 0, "H, W must be divisible by 4"
    assert w.shape == (3 * C, C)
    assert b.shape == (C,)

    cap = _vmem_capacity_bytes()
    if vmem_limit_bytes is None:
        vmem_limit_bytes = max(32 * 2**20, min(int(0.75 * cap), 100 * 2**20))
    in_bytes = jnp.dtype(x.dtype).itemsize
    if tile_h is None or tile_w is None:
        auto_h, auto_w = _pick_tiles(N, H, W, C, in_bytes,
                                     budget=int(0.8 * vmem_limit_bytes))
        tile_h = auto_h if tile_h is None else tile_h
        tile_w = auto_w if tile_w is None else tile_w
    assert H % tile_h == 0 and tile_h % 4 == 0
    assert W % tile_w == 0 and tile_w % 4 == 0
    if tile_w != W:
        assert tile_w % 8 == 0, "tile_w must be a multiple of 8 when tiling W"

    if force_split:
        mode = "split"
    elif 3 * C <= 128:
        mode = "concat3"
    elif 2 * C <= 128:
        mode = "concat2"
    else:
        mode = "split"

    wq = w.astype(weight_dtype)                    # single stacked weight input
    b2 = b.reshape(1, C).astype(jnp.float32)

    kernel = functools.partial(msc_kernel, mode=mode)
    return pl.pallas_call(
        kernel,
        out_shape=jax.ShapeDtypeStruct((N, H, W, C), x.dtype),
        grid_spec=pltpu.PrefetchScalarGridSpec(
            num_scalar_prefetch=0,
            grid=(N, H // tile_h, W // tile_w),
            in_specs=[
                pl.BlockSpec((1, tile_h, tile_w, C),
                             lambda n, h, ww: (n, h, ww, 0)),
                pl.BlockSpec((3 * C, C), lambda n, h, ww: (0, 0)),
                pl.BlockSpec((1, C), lambda n, h, ww: (0, 0)),
            ],
            out_specs=pl.BlockSpec((1, tile_h, tile_w, C),
                                   lambda n, h, ww: (n, h, ww, 0)),
        ),
        compiler_params=pltpu.CompilerParams(
            dimension_semantics=("parallel", "parallel", "parallel"),
            vmem_limit_bytes=int(vmem_limit_bytes),
        ),
    )(x, wq, b2)


def msc_forward(x_nchw, w, b, **kw):
    """NCHW wrapper matching the PyTorch module interface.  NOTE: the two
    transposes are full extra HBM read+write passes on a memory-bound op;
    production code should call msc_forward_nhwc directly (NHWC end-to-end)."""
    out = msc_forward_nhwc(jnp.transpose(x_nchw, (0, 2, 3, 1)), w, b, **kw)
    return jnp.transpose(out, (0, 3, 1, 2))


# ----------------------------------------------------------------------------
# Pure-JAX reference (original module math: pool -> nearest up -> concat -> 1x1)
# ----------------------------------------------------------------------------
def msc_reference_nhwc(x, w, b):
    N, H, W, C = x.shape

    def pool_up(xx, k):
        p = jnp.max(xx.reshape(N, H // k, k, W // k, k, C), axis=(2, 4))
        return jnp.repeat(jnp.repeat(p, k, axis=1), k, axis=2)

    cat = jnp.concatenate([x, pool_up(x, 2), pool_up(x, 4)], axis=-1)
    y = cat.reshape(N * H * W, 3 * C) @ w + b.reshape(1, C)
    return jnp.maximum(y, 0.0).reshape(N, H, W, C)


# ----------------------------------------------------------------------------
# Demo / self-test
# ----------------------------------------------------------------------------
if __name__ == "__main__":
    key = jax.random.PRNGKey(0)

    def run(x, wt, bi):
        # Prefer the channel-count-dependent matmul mode; fall back to the
        # always-supported split path if lane-dim concat is unavailable on
        # this jax/libtpu version.
        try:
            return jax.block_until_ready(msc_forward_nhwc(x, wt, bi))
        except Exception:
            return jax.block_until_ready(
                msc_forward_nhwc(x, wt, bi, force_split=True))

    # Channel counts chosen to exercise all three matmul paths:
    #   C=16  -> 3C<=128 single concat matmul
    #   C=64  -> 2C<=128 merged pooled matmul
    #   C=128 -> fully split path with a lane-dense (multiple-of-128) channel dim
    configs = [(2, 16, 16, 16), (2, 64, 16, 16), (1, 128, 32, 32)]
    # Tolerance reflects bf16 matmul operands (TPU default matmul precision);
    # real structural bugs produce O(0.1+) errors and are still caught.
    ATOL, RTOL = 3e-2, 2e-2

    for (N, C, H, W) in configs:
        key, kx, kw_, kb = jax.random.split(key, 4)
        x = jax.random.normal(kx, (N, H, W, C), dtype=jnp.float32)
        wt = jax.random.normal(kw_, (3 * C, C), dtype=jnp.float32) * 0.1
        bi = jax.random.normal(kb, (C,), dtype=jnp.float32) * 0.1

        out = run(x, wt, bi)
        ref = msc_reference_nhwc(x, wt, bi)
        assert out.shape == ref.shape
        assert jnp.allclose(out, ref, atol=ATOL, rtol=RTOL), (N, C, H, W)

    # NCHW interface parity with the PyTorch module (layout wrapper).
    N, C, H, W = 2, 16, 16, 16
    key, kx, kw_, kb = jax.random.split(key, 4)
    x_nchw = jax.random.normal(kx, (N, C, H, W), dtype=jnp.float32)
    wt = jax.random.normal(kw_, (3 * C, C), dtype=jnp.float32) * 0.1
    bi = jax.random.normal(kb, (C,), dtype=jnp.float32) * 0.1
    try:
        out = jax.block_until_ready(msc_forward(x_nchw, wt, bi))
    except Exception:
        out = jax.block_until_ready(msc_forward(x_nchw, wt, bi, force_split=True))
    ref = jnp.transpose(
        msc_reference_nhwc(jnp.transpose(x_nchw, (0, 2, 3, 1)), wt, bi),
        (0, 3, 1, 2))
    assert jnp.allclose(out, ref, atol=ATOL, rtol=RTOL)

    print("KERNEL_OK")
</pallas_src>

<mosaic_0001>
module attributes {stable_mosaic.version = 11 : i64} {
  func.func @msc_kernel(%arg0: i32, %arg1: i32, %arg2: i32, %arg3: memref<1x16x16x16xf32, #tpu.memory_space<vmem>>, %arg4: memref<48x16xbf16, #tpu.memory_space<vmem>>, %arg5: memref<1x16xf32, #tpu.memory_space<vmem>>, %arg6: memref<1x16x16x16xf32, #tpu.memory_space<vmem>>) attributes {dimension_semantics = [#tpu.dimension_semantics<parallel>, #tpu.dimension_semantics<parallel>, #tpu.dimension_semantics<parallel>], iteration_bounds = array<i64: 2, 1, 1>, scalar_prefetch = 0 : i64, scratch_operands = 0 : i64, tpu.core_type = #tpu.core_type<tc>, window_params = [{transform_indices = @transform_0, window_bounds = array<i64: 1, 16, 16, 16>}, {pipeline_mode = #tpu.pipeline_mode<synchronous>, transform_indices = @transform_1, window_bounds = array<i64: 48, 16>}, {pipeline_mode = #tpu.pipeline_mode<synchronous>, transform_indices = @transform_2, window_bounds = array<i64: 1, 16>}, {transform_indices = @transform_3, window_bounds = array<i64: 1, 16, 16, 16>}]} {
    %c0 = arith.constant 0 : index
    %c0_0 = arith.constant 0 : index
    %c0_1 = arith.constant 0 : index
    %c0_2 = arith.constant 0 : index
    %0 = vector.load %arg3[%c0, %c0_0, %c0_1, %c0_2] : memref<1x16x16x16xf32, #tpu.memory_space<vmem>>, vector<1x16x16x16xf32>
    %1 = vector.shape_cast %0 : vector<1x16x16x16xf32> to vector<16x16x16xf32>
    %2 = tpu.iota {dimensions = array<i32: 1>} : vector<1x16x1xi32>
    %c1_i32 = arith.constant 1 : i32
    %3 = vector.broadcast %c1_i32 : i32 to vector<1x16x1xi32>
    %4 = arith.andi %2, %3 : vector<1x16x1xi32>
    %c1_i32_3 = arith.constant 1 : i32
    %5 = vector.broadcast %c1_i32_3 : i32 to vector<1x16x1xi32>
    %6 = arith.cmpi eq, %4, %5 : vector<1x16x1xi32>
    %c3_i32 = arith.constant 3 : i32
    %7 = vector.broadcast %c3_i32 : i32 to vector<1x16x1xi32>
    %8 = arith.andi %2, %7 : vector<1x16x1xi32>
    %c2_i32 = arith.constant 2 : i32
    %9 = vector.broadcast %c2_i32 : i32 to vector<1x16x1xi32>
    %10 = arith.cmpi sge, %8, %9 : vector<1x16x1xi32>
    %11 = vector.shape_cast %1 : vector<16x16x16xf32> to vector<8x2x16x16xf32>
    %12 = vector.extract_strided_slice %11 {offsets = [0, 0, 0, 0], sizes = [8, 1, 16, 16], strides = [1, 1, 1, 1]} : vector<8x2x16x16xf32> to vector<8x1x16x16xf32>
    %13 = vector.shape_cast %12 : vector<8x1x16x16xf32> to vector<8x16x16xf32>
    %14 = vector.extract_strided_slice %11 {offsets = [0, 1, 0, 0], sizes = [8, 1, 16, 16], strides = [1, 1, 1, 1]} : vector<8x2x16x16xf32> to vector<8x1x16x16xf32>
    %15 = vector.shape_cast %14 : vector<8x1x16x16xf32> to vector<8x16x16xf32>
    %16 = arith.maximumf %13, %15 : vector<8x16x16xf32>
    %17 = vector.extract_strided_slice %16 {offsets = [0, 1, 0], sizes = [8, 15, 16], strides = [1, 1, 1]} : vector<8x16x16xf32> to vector<8x15x16xf32>
    %18 = vector.extract_strided_slice %16 {offsets = [0, 0, 0], sizes = [8, 1, 16], strides = [1, 1, 1]} : vector<8x16x16xf32> to vector<8x1x16xf32>
    %19 = tpu.concatenate %17, %18 in 1 : vector<8x15x16xf32>, vector<8x1x16xf32> -> vector<8x16x16xf32>
    %20 = arith.maximumf %16, %19 : vector<8x16x16xf32>
    %21 = vector.extract_strided_slice %20 {offsets = [0, 15, 0], sizes = [8, 1, 16], strides = [1, 1, 1]} : vector<8x16x16xf32> to vector<8x1x16xf32>
    %22 = vector.extract_strided_slice %20 {offsets = [0, 0, 0], sizes = [8, 15, 16], strides = [1, 1, 1]} : vector<8x16x16xf32> to vector<8x15x16xf32>
    %23 = tpu.concatenate %21, %22 in 1 : vector<8x1x16xf32>, vector<8x15x16xf32> -> vector<8x16x16xf32>
    %24 = vector.shape_cast %6 : vector<1x16x1xi1> to vector<1x16x1xi1>
    %25 = vector.broadcast %24 : vector<1x16x1xi1> to vector<8x16x16xi1>
    %26 = arith.select %25, %23, %20 : vector<8x16x16xi1>, vector<8x16x16xf32>
    %27 = vector.shape_cast %26 : vector<8x16x16xf32> to vector<4x2x16x16xf32>
    %28 = vector.extract_strided_slice %27 {offsets = [0, 0, 0, 0], sizes = [4, 1, 16, 16], strides = [1, 1, 1, 1]} : vector<4x2x16x16xf32> to vector<4x1x16x16xf32>
    %29 = vector.shape_cast %28 : vector<4x1x16x16xf32> to vector<4x16x16xf32>
    %30 = vector.extract_strided_slice %27 {offsets = [0, 1, 0, 0], sizes = [4, 1, 16, 16], strides = [1, 1, 1, 1]} : vector<4x2x16x16xf32> to vector<4x1x16x16xf32>
    %31 = vector.shape_cast %30 : vector<4x1x16x16xf32> to vector<4x16x16xf32>
    %32 = arith.maximumf %29, %31 : vector<4x16x16xf32>
    %33 = vector.extract_strided_slice %32 {offsets = [0, 2, 0], sizes = [4, 14, 16], strides = [1, 1, 1]} : vector<4x16x16xf32> to vector<4x14x16xf32>
    %34 = vector.extract_strided_slice %32 {offsets = [0, 0, 0], sizes = [4, 2, 16], strides = [1, 1, 1]} : vector<4x16x16xf32> to vector<4x2x16xf32>
    %35 = tpu.concatenate %33, %34 in 1 : vector<4x14x16xf32>, vector<4x2x16xf32> -> vector<4x16x16xf32>
    %36 = arith.maximumf %32, %35 : vector<4x16x16xf32>
    %37 = vector.extract_strided_slice %36 {offsets = [0, 14, 0], sizes = [4, 2, 16], strides = [1, 1, 1]} : vector<4x16x16xf32> to vector<4x2x16xf32>
    %38 = vector.extract_strided_slice %36 {offsets = [0, 0, 0], sizes = [4, 14, 16], strides = [1, 1, 1]} : vector<4x16x16xf32> to vector<4x14x16xf32>
    %39 = tpu.concatenate %37, %38 in 1 : vector<4x2x16xf32>, vector<4x14x16xf32> -> vector<4x16x16xf32>
    %40 = vector.shape_cast %10 : vector<1x16x1xi1> to vector<1x16x1xi1>
    %41 = vector.broadcast %40 : vector<1x16x1xi1> to vector<4x16x16xi1>
    %42 = arith.select %41, %39, %36 : vector<4x16x16xi1>, vector<4x16x16xf32>
    %43 = arith.truncf %1 : vector<16x16x16xf32> to vector<16x16x16xbf16>
    %44 = arith.truncf %26 : vector<8x16x16xf32> to vector<8x16x16xbf16>
    %45 = arith.truncf %42 : vector<4x16x16xf32> to vector<4x16x16xbf16>
    %c0_4 = arith.constant 0 : index
    %c0_5 = arith.constant 0 : index
    %46 = vector.load %arg5[%c0_4, %c0_5] : memref<1x16xf32, #tpu.memory_space<vmem>>, vector<1x16xf32>
    %47 = vector.shape_cast %44 : vector<8x16x16xbf16> to vector<8x1x16x16xbf16>
    %48 = vector.shape_cast %47 : vector<8x1x16x16xbf16> to vector<8x1x16x16xbf16>
    %49 = vector.broadcast %48 : vector<8x1x16x16xbf16> to vector<8x2x16x16xbf16>
    %50 = vector.shape_cast %49 : vector<8x2x16x16xbf16> to vector<16x16x16xbf16>
    %51 = vector.shape_cast %45 : vector<4x16x16xbf16> to vector<4x1x16x16xbf16>
    %52 = vector.shape_cast %51 : vector<4x1x16x16xbf16> to vector<4x1x16x16xbf16>
    %53 = vector.broadcast %52 : vector<4x1x16x16xbf16> to vector<4x4x16x16xbf16>
    %54 = vector.shape_cast %53 : vector<4x4x16x16xbf16> to vector<16x16x16xbf16>
    %55 = tpu.concatenate %43, %50, %54 in 2 : vector<16x16x16xbf16>, vector<16x16x16xbf16>, vector<16x16x16xbf16> -> vector<16x16x48xbf16>
    %56 = vector.shape_cast %55 : vector<16x16x48xbf16> to vector<256x48xbf16>
    %c0_6 = arith.constant 0 : index
    %c0_7 = arith.constant 0 : index
    %57 = vector.load %arg4[%c0_6, %c0_7] : memref<48x16xbf16, #tpu.memory_space<vmem>>, vector<48x16xbf16>
    %cst = arith.constant dense<0.000000e+00> : vector<256x16xf32>
    %58 = tpu.matmul %56, %57, %cst {dimension_numbers = #tpu.dot_dimension_numbers<[1], [0], [0], [1], [0, 0, 1, 1], [], []>} : vector<256x48xbf16>, vector<48x16xbf16>, vector<256x16xf32> -> vector<256x16xf32>
    %59 = vector.broadcast %46 : vector<1x16xf32> to vector<256x16xf32>
    %60 = arith.addf %58, %59 : vector<256x16xf32>
    %cst_8 = arith.constant 0.000000e+00 : f32
    %61 = vector.broadcast %cst_8 : f32 to vector<256x16xf32>
    %62 = arith.maximumf %60, %61 : vector<256x16xf32>
    %63 = vector.shape_cast %62 : vector<256x16xf32> to vector<16x16x16xf32>
    %c0_9 = arith.constant 0 : index
    %c0_10 = arith.constant 0 : index
    %c0_11 = arith.constant 0 : index
    %c0_12 = arith.constant 0 : index
    %64 = vector.load %arg6[%c0_9, %c0_10, %c0_11, %c0_12] : memref<1x16x16x16xf32, #tpu.memory_space<vmem>>, vector<1x16x16x16xf32>
    %65 = vector.shape_cast %64 : vector<1x16x16x16xf32> to vector<16x16x16xf32>
    %66 = vector.shape_cast %63 : vector<16x16x16xf32> to vector<1x16x16x16xf32>
    tpu.vector_store %arg6[%c0_9, %c0_10, %c0_11, %c0_12], %66 {strides = array<i32>} : memref<1x16x16x16xf32, #tpu.memory_space<vmem>>, vector<1x16x16x16xf32>,
    return
  }
  func.func @transform_0(%arg0: i32, %arg1: i32, %arg2: i32) -> (i32, i32, i32, i32) {
    %c0_i32 = arith.constant 0 : i32
    %c0_i32_0 = arith.constant 0 : i32
    return %arg0, %arg1, %arg2, %c0_i32 : i32, i32, i32, i32
  }
  func.func @transform_1(%arg0: i32, %arg1: i32, %arg2: i32) -> (i32, i32) {
    %c0_i32 = arith.constant 0 : i32
    %c0_i32_0 = arith.constant 0 : i32
    %c0_i32_1 = arith.constant 0 : i32
    return %c0_i32, %c0_i32_0 : i32, i32
  }
  func.func @transform_2(%arg0: i32, %arg1: i32, %arg2: i32) -> (i32, i32) {
    %c0_i32 = arith.constant 0 : i32
    %c0_i32_0 = arith.constant 0 : i32
    %c0_i32_1 = arith.constant 0 : i32
    return %c0_i32, %c0_i32_0 : i32, i32
  }
  func.func @transform_3(%arg0: i32, %arg1: i32, %arg2: i32) -> (i32, i32, i32, i32) {
    %c0_i32 = arith.constant 0 : i32
    %c0_i32_0 = arith.constant 0 : i32
    return %arg0, %arg1, %arg2, %c0_i32 : i32, i32, i32, i32
  }
}

module attributes {stable_mosaic.version = 11 : i64} {
  func.func @msc_kernel(%arg0: i32, %arg1: i32, %arg2: i32, %arg3: memref<1x16x16x16xf32, #tpu.memory_space<vmem>>, %arg4: memref<48x16xbf16, #tpu.memory_space<vmem>>, %arg5: memref<1x16xf32, #tpu.memory_space<vmem>>, %arg6: memref<1x16x16x16xf32, #tpu.memory_space<vmem>>) attributes {dimension_semantics = [#tpu.dimension_semantics<parallel>, #tpu.dimension_semantics<parallel>, #tpu.dimension_semantics<parallel>], iteration_bounds = array<i64: 2, 1, 1>, scalar_prefetch = 0 : i64, scratch_operands = 0 : i64, tpu.core_type = #tpu.core_type<tc>, window_params = [{transform_indices = @transform_0, window_bounds = array<i64: 1, 16, 16, 16>}, {pipeline_mode = #tpu.pipeline_mode<synchronous>, transform_indices = @transform_1, window_bounds = array<i64: 48, 16>}, {pipeline_mode = #tpu.pipeline_mode<synchronous>, transform_indices = @transform_2, window_bounds = array<i64: 1, 16>}, {transform_indices = @transform_3, window_bounds = array<i64: 1, 16, 16, 16>}]} {
    %c0 = arith.constant 0 : index
    %c0_0 = arith.constant 0 : index
    %c0_1 = arith.constant 0 : index
    %c0_2 = arith.constant 0 : index
    %0 = vector.load %arg3[%c0, %c0_0, %c0_1, %c0_2] : memref<1x16x16x16xf32, #tpu.memory_space<vmem>>, vector<1x16x16x16xf32>
    %1 = vector.shape_cast %0 : vector<1x16x16x16xf32> to vector<16x16x16xf32>
    %2 = tpu.iota {dimensions = array<i32: 1>} : vector<1x16x1xi32>
    %c1_i32 = arith.constant 1 : i32
    %3 = vector.broadcast %c1_i32 : i32 to vector<1x16x1xi32>
    %4 = arith.andi %2, %3 : vector<1x16x1xi32>
    %c1_i32_3 = arith.constant 1 : i32
    %5 = vector.broadcast %c1_i32_3 : i32 to vector<1x16x1xi32>
    %6 = arith.cmpi eq, %4, %5 : vector<1x16x1xi32>
    %c3_i32 = arith.constant 3 : i32
    %7 = vector.broadcast %c3_i32 : i32 to vector<1x16x1xi32>
    %8 = arith.andi %2, %7 : vector<1x16x1xi32>
    %c2_i32 = arith.constant 2 : i32
    %9 = vector.broadcast %c2_i32 : i32 to vector<1x16x1xi32>
    %10 = arith.cmpi sge, %8, %9 : vector<1x16x1xi32>
    %11 = vector.shape_cast %1 : vector<16x16x16xf32> to vector<8x2x16x16xf32>
    %12 = vector.extract_strided_slice %11 {offsets = [0, 0, 0, 0], sizes = [8, 1, 16, 16], strides = [1, 1, 1, 1]} : vector<8x2x16x16xf32> to vector<8x1x16x16xf32>
    %13 = vector.shape_cast %12 : vector<8x1x16x16xf32> to vector<8x16x16xf32>
    %14 = vector.extract_strided_slice %11 {offsets = [0, 1, 0, 0], sizes = [8, 1, 16, 16], strides = [1, 1, 1, 1]} : vector<8x2x16x16xf32> to vector<8x1x16x16xf32>
    %15 = vector.shape_cast %14 : vector<8x1x16x16xf32> to vector<8x16x16xf32>
    %16 = arith.maximumf %13, %15 : vector<8x16x16xf32>
    %17 = vector.extract_strided_slice %16 {offsets = [0, 1, 0], sizes = [8, 15, 16], strides = [1, 1, 1]} : vector<8x16x16xf32> to vector<8x15x16xf32>
    %18 = vector.extract_strided_slice %16 {offsets = [0, 0, 0], sizes = [8, 1, 16], strides = [1, 1, 1]} : vector<8x16x16xf32> to vector<8x1x16xf32>
    %19 = tpu.concatenate %17, %18 in 1 : vector<8x15x16xf32>, vector<8x1x16xf32> -> vector<8x16x16xf32>
    %20 = arith.maximumf %16, %19 : vector<8x16x16xf32>
    %21 = vector.extract_strided_slice %20 {offsets = [0, 15, 0], sizes = [8, 1, 16], strides = [1, 1, 1]} : vector<8x16x16xf32> to vector<8x1x16xf32>
    %22 = vector.extract_strided_slice %20 {offsets = [0, 0, 0], sizes = [8, 15, 16], strides = [1, 1, 1]} : vector<8x16x16xf32> to vector<8x15x16xf32>
    %23 = tpu.concatenate %21, %22 in 1 : vector<8x1x16xf32>, vector<8x15x16xf32> -> vector<8x16x16xf32>
    %24 = vector.shape_cast %6 : vector<1x16x1xi1> to vector<1x16x1xi1>
    %25 = vector.broadcast %24 : vector<1x16x1xi1> to vector<8x16x16xi1>
    %26 = arith.select %25, %23, %20 : vector<8x16x16xi1>, vector<8x16x16xf32>
    %27 = vector.shape_cast %26 : vector<8x16x16xf32> to vector<4x2x16x16xf32>
    %28 = vector.extract_strided_slice %27 {offsets = [0, 0, 0, 0], sizes = [4, 1, 16, 16], strides = [1, 1, 1, 1]} : vector<4x2x16x16xf32> to vector<4x1x16x16xf32>
    %29 = vector.shape_cast %28 : vector<4x1x16x16xf32> to vector<4x16x16xf32>
    %30 = vector.extract_strided_slice %27 {offsets = [0, 1, 0, 0], sizes = [4, 1, 16, 16], strides = [1, 1, 1, 1]} : vector<4x2x16x16xf32> to vector<4x1x16x16xf32>
    %31 = vector.shape_cast %30 : vector<4x1x16x16xf32> to vector<4x16x16xf32>
    %32 = arith.maximumf %29, %31 : vector<4x16x16xf32>
    %33 = vector.extract_strided_slice %32 {offsets = [0, 2, 0], sizes = [4, 14, 16], strides = [1, 1, 1]} : vector<4x16x16xf32> to vector<4x14x16xf32>
    %34 = vector.extract_strided_slice %32 {offsets = [0, 0, 0], sizes = [4, 2, 16], strides = [1, 1, 1]} : vector<4x16x16xf32> to vector<4x2x16xf32>
    %35 = tpu.concatenate %33, %34 in 1 : vector<4x14x16xf32>, vector<4x2x16xf32> -> vector<4x16x16xf32>
    %36 = arith.maximumf %32, %35 : vector<4x16x16xf32>
    %37 = vector.extract_strided_slice %36 {offsets = [0, 14, 0], sizes = [4, 2, 16], strides = [1, 1, 1]} : vector<4x16x16xf32> to vector<4x2x16xf32>
    %38 = vector.extract_strided_slice %36 {offsets = [0, 0, 0], sizes = [4, 14, 16], strides = [1, 1, 1]} : vector<4x16x16xf32> to vector<4x14x16xf32>
    %39 = tpu.concatenate %37, %38 in 1 : vector<4x2x16xf32>, vector<4x14x16xf32> -> vector<4x16x16xf32>
    %40 = vector.shape_cast %10 : vector<1x16x1xi1> to vector<1x16x1xi1>
    %41 = vector.broadcast %40 : vector<1x16x1xi1> to vector<4x16x16xi1>
    %42 = arith.select %41, %39, %36 : vector<4x16x16xi1>, vector<4x16x16xf32>
    %43 = arith.truncf %1 : vector<16x16x16xf32> to vector<16x16x16xbf16>
    %44 = arith.truncf %26 : vector<8x16x16xf32> to vector<8x16x16xbf16>
    %45 = arith.truncf %42 : vector<4x16x16xf32> to vector<4x16x16xbf16>
    %c0_4 = arith.constant 0 : index
    %c0_5 = arith.constant 0 : index
    %46 = vector.load %arg5[%c0_4, %c0_5] : memref<1x16xf32, #tpu.memory_space<vmem>>, vector<1x16xf32>
    %47 = vector.shape_cast %43 : vector<16x16x16xbf16> to vector<256x16xbf16>
    %c0_6 = arith.constant 0 : index
    %c0_7 = arith.constant 0 : index
    %48 = vector.load %arg4[%c0_6, %c0_7] : memref<48x16xbf16, #tpu.memory_space<vmem>>, vector<16x16xbf16>
    %cst = arith.constant dense<0.000000e+00> : vector<256x16xf32>
    %49 = tpu.matmul %47, %48, %cst {dimension_numbers = #tpu.dot_dimension_numbers<[1], [0], [0], [1], [0, 0, 1, 1], [], []>} : vector<256x16xbf16>, vector<16x16xbf16>, vector<256x16xf32> -> vector<256x16xf32>
    %50 = vector.shape_cast %45 : vector<4x16x16xbf16> to vector<64x16xbf16>
    %c32 = arith.constant 32 : index
    %c0_8 = arith.constant 0 : index
    %51 = vector.load %arg4[%c32, %c0_8] : memref<48x16xbf16, #tpu.memory_space<vmem>>, vector<16x16xbf16>
    %cst_9 = arith.constant dense<0.000000e+00> : vector<64x16xf32>
    %52 = tpu.matmul %50, %51, %cst_9 {dimension_numbers = #tpu.dot_dimension_numbers<[1], [0], [0], [1], [0, 0, 1, 1], [], []>} : vector<64x16xbf16>, vector<16x16xbf16>, vector<64x16xf32> -> vector<64x16xf32>
    %53 = vector.broadcast %46 : vector<1x16xf32> to vector<64x16xf32>
    %54 = arith.addf %52, %53 : vector<64x16xf32>
    %55 = vector.shape_cast %54 : vector<64x16xf32> to vector<4x1x16x16xf32>
    %56 = vector.shape_cast %55 : vector<4x1x16x16xf32> to vector<4x1x16x16xf32>
    %57 = vector.broadcast %56 : vector<4x1x16x16xf32> to vector<4x2x16x16xf32>
    %58 = vector.shape_cast %57 : vector<4x2x16x16xf32> to vector<128x16xf32>
    %59 = vector.shape_cast %44 : vector<8x16x16xbf16> to vector<128x16xbf16>
    %c16 = arith.constant 16 : index
    %c0_10 = arith.constant 0 : index
    %60 = vector.load %arg4[%c16, %c0_10] : memref<48x16xbf16, #tpu.memory_space<vmem>>, vector<16x16xbf16>
    %cst_11 = arith.constant dense<0.000000e+00> : vector<128x16xf32>
    %61 = tpu.matmul %59, %60, %cst_11 {dimension_numbers = #tpu.dot_dimension_numbers<[1], [0], [0], [1], [0, 0, 1, 1], [], []>} : vector<128x16xbf16>, vector<16x16xbf16>, vector<128x16xf32> -> vector<128x16xf32>
    %62 = arith.addf %61, %58 : vector<128x16xf32>
    %63 = vector.shape_cast %49 : vector<256x16xf32> to vector<8x2x16x16xf32>
    %64 = vector.shape_cast %62 : vector<128x16xf32> to vector<8x1x16x16xf32>
    %65 = vector.broadcast %64 : vector<8x1x16x16xf32> to vector<8x2x16x16xf32>
    %66 = arith.addf %63, %65 : vector<8x2x16x16xf32>
    %cst_12 = arith.constant 0.000000e+00 : f32
    %67 = vector.broadcast %cst_12 : f32 to vector<8x2x16x16xf32>
    %68 = arith.maximumf %66, %67 : vector<8x2x16x16xf32>
    %69 = vector.shape_cast %68 : vector<8x2x16x16xf32> to vector<16x16x16xf32>
    %c0_13 = arith.constant 0 : index
    %c0_14 = arith.constant 0 : index
    %c0_15 = arith.constant 0 : index
    %c0_16 = arith.constant 0 : index
    %70 = vector.load %arg6[%c0_13, %c0_14, %c0_15, %c0_16] : memref<1x16x16x16xf32, #tpu.memory_space<vmem>>, vector<1x16x16x16xf32>
    %71 = vector.shape_cast %70 : vector<1x16x16x16xf32> to vector<16x16x16xf32>
    %72 = vector.shape_cast %69 : vector<16x16x16xf32> to vector<1x16x16x16xf32>
    tpu.vector_store %arg6[%c0_13, %c0_14, %c0_15, %c0_16], %72 {strides = array<i32>} : memref<1x16x16x16xf32, #tpu.memory_space<vmem>>, vector<1x16x16x16xf32>,
    return
  }
  func.func @transform_0(%arg0: i32, %arg1: i32, %arg2: i32) -> (i32, i32, i32, i32) {
    %c0_i32 = arith.constant 0 : i32
    %c0_i32_0 = arith.constant 0 : i32
    return %arg0, %arg1, %arg2, %c0_i32 : i32, i32, i32, i32
  }
  func.func @transform_1(%arg0: i32, %arg1: i32, %arg2: i32) -> (i32, i32) {
    %c0_i32 = arith.constant 0 : i32
    %c0_i32_0 = arith.constant 0 : i32
    %c0_i32_1 = arith.constant 0 : i32
    return %c0_i32, %c0_i32_0 : i32, i32
  }
  func.func @transform_2(%arg0: i32, %arg1: i32, %arg2: i32) -> (i32, i32) {
    %c0_i32 = arith.constant 0 : i32
    %c0_i32_0 = arith.constant 0 : i32
    %c0_i32_1 = arith.constant 0 : i32
    return %c0_i32, %c0_i32_0 : i32, i32
  }
  func.func @transform_3(%arg0: i32, %arg1: i32, %arg2: i32) -> (i32, i32, i32, i32) {
    %c0_i32 = arith.constant 0 : i32
    %c0_i32_0 = arith.constant 0 : i32
    return %arg0, %arg1, %arg2, %c0_i32 : i32, i32, i32, i32
  }
}

</mosaic_0001>

<llo_original>
// kernel: tpu_custom_call.1
$region0: #{tpu_custom_call.1}
  #allocation0 [shape = 'u32[]', space=smem, size = 0x4, offset = 0x4, fixed_abs, tag = 'smem constant byte address 0x4 - core index']
  #allocation1 [shape = 'u32[144,128]{1,0:T(1,128)}', space=vmem, size = 0x12000, scoped, tag = 'internal scratch']
  %s0 = inlined_call_operand.hbm [shape: f32[2,16,16,16], index: 0, kind: input, shape index: {}]
  %s1 = inlined_call_operand.vmem [shape: bf16[48,16], index: 1, kind: input, shape index: {}]
  %s2 = inlined_call_operand.vmem [shape: f32[1,16], index: 2, kind: input, shape index: {}]
  %s3 = inlined_call_operand.hbm [shape: f32[2,16,16,16], index: 3, kind: output, shape index: {}]
  %s4 = sld [smem:[#allocation0]]
  $region49: #{tpu_custom_call.1} parent=0
    _
  %s6 = ssub.s32 1, %s4
  %s7 = scalar_select 0, %s6, %s4
  $region1: #{tpu_custom_call.1} parent=0
    #allocation2 [shape = 'u8[262144]{0}', space=vmem, size = 0x40000, scoped, tag = 'input window, operand 0']
    #allocation3 [shape = 's32[2]{0}', space=sflag, size = 0x8, scoped, tag = 'scoped memory for tpu_custom_call.1']
    #allocation4 [shape = 's32[2]{0}', space=sflag, size = 0x8, scoped, tag = 'scoped memory for tpu_custom_call.1']
    #allocation5 [shape = 'u8[262144]{0}', space=vmem, size = 0x40000, scoped, tag = 'output window, operand 0']
    %8 = vsyncpa [#allocation3], 0
    %s9 = scalar_lea.sflag [#allocation3], 1
    %10 = vsyncpa %s9, 0
    %11 = vsyncpa [#allocation4], 0
    %s12 = scalar_lea.sflag [#allocation4], 1
    %13 = vsyncpa %s12, 0
    loop: start=0, step=1, limit=4
    $region2: #{tpu_custom_call.1} parent=1 // loop_pre_header
      _
    $region3: #{tpu_custom_call.1} parent=1 // loop_header
      %s15 = sphi 0, %s19
      %p16 = scmp.ge.s32.totalorder %s15, 4
      %s22 = sphi 0, %s41
      %s23 = sphi 0, %s37
      %s24 = sphi 0, %s33
      %s25 = sphi 0, %s22
      %s26 = sphi 0, %s23
      %s27 = sphi 0, %s24
      %s28 = sphi 0, %s25
      %s29 = sphi 0, %s26
      %s30 = sphi 0, %s27
      %s48 = sphi 0, %s50
      %s51 = sphi 0, %s48
      %s52 = sphi 0, %s51
      %s68 = sphi 0, %s52
      %s72 = sphi 0, %s72
      %s74 = sphi 0, %s72
      %s75 = sphi 0, %s74
      %s89 = sphi 0, %s75
      %s93 = sphi 0, %s93
      %s95 = sphi 0, %s93
      %s96 = sphi 0, %s95
      %s110 = sphi 0, %s96
      %s120 = sphi 0, %s122
      %s123 = sphi 0, %s120
      %s124 = sphi 0, %s123
      %s140 = sphi 0, %s124
    $region4: #{tpu_custom_call.1} parent=1 // loop_header_branch
      %18 = sbr.rel (%p16) target = $region8
    $region5: #{tpu_custom_call.1} parent=1 // loop_body
      %s20 = ssub.s32 %s15, 1
      %s21 = ssub.s32 %s15, 2
      %s31 = sadd.s32 1, %s24
      %p32 = scmp.ge.s32.totalorder %s31, 1
      %s33 = scalar_select %p32, 0, %s31
      %s34 = sadd.s32 1, %s23
      %s35 = scalar_select %p32, %s34, %s23
      %p36 = scmp.ge.s32.totalorder %s35, 1
      %s37 = scalar_select %p36, 0, %s35
      %s38 = sadd.s32 1, %s22
      %s39 = scalar_select %p36, %s38, %s22
      %p40 = scmp.ge.s32.totalorder %s39, 2
      %s41 = scalar_select %p40, 0, %s39
      %s42 = ssub.s32 %s22, %s41
      %s43 = ssub.s32 %s23, %s37
      %s44 = sor.u32 %s42, %s43
      %s45 = ssub.s32 %s24, %s33
      %s46 = sor.u32 %s44, %s45
      %p47 = scmp.eq.s32.totalorder %s46, 0
      %s49 = sadd.s32 %s48, 1
      %s50 = scalar_select %p47, %s48, %s49
      %p53 = pneg %p47
      %p54 = scmp.eq.s32.totalorder %s15, 1
      %p55 = por %p53, %p54
      %p56 = scmp.ne.s32.totalorder %s48, %s51
      %p57 = scmp.eq.s32.totalorder %s15, 0
      %p58 = por %p56, %p57
      %p59 = scmp.ne.s32.totalorder %s48, %s51
      %p60 = scmp.eq.s32.totalorder %s20, 1
      %p61 = por %p59, %p60
      %p62 = scmp.ne.s32.totalorder %s51, %s52
      %p63 = scmp.eq.s32.totalorder %s20, 0
      %p64 = por %p62, %p63
      %p65 = scmp.ne.s32.totalorder %s51, %s52
      %p66 = scmp.eq.s32.totalorder %s21, 1
      %p67 = por %p65, %p66
      %p69 = scmp.ne.s32.totalorder %s52, %s68
      %p70 = scmp.eq.s32.totalorder %s21, 0
      %p71 = por %p69, %p70
      %s73 = sadd.s32 %s72, 1
      %p76 = scmp.eq.s32.totalorder %s15, 1
      %p77 = scmp.ne.s32.totalorder %s72, %s74
      %p78 = scmp.eq.s32.totalorder %s15, 0
      %p79 = por %p77, %p78
      %p80 = scmp.ne.s32.totalorder %s72, %s74
      %p81 = scmp.eq.s32.totalorder %s20, 1
      %p82 = por %p80, %p81
      %p83 = scmp.ne.s32.totalorder %s74, %s75
      %p84 = scmp.eq.s32.totalorder %s20, 0
      %p85 = por %p83, %p84
      %p86 = scmp.ne.s32.totalorder %s74, %s75
      %p87 = scmp.eq.s32.totalorder %s21, 1
      %p88 = por %p86, %p87
      %p90 = scmp.ne.s32.totalorder %s75, %s89
      %p91 = scmp.eq.s32.totalorder %s21, 0
      %p92 = por %p90, %p91
      %s94 = sadd.s32 %s93, 1
      %p97 = scmp.eq.s32.totalorder %s15, 1
      %p98 = scmp.ne.s32.totalorder %s93, %s95
      %p99 = scmp.eq.s32.totalorder %s15, 0
      %p100 = por %p98, %p99
      %p101 = scmp.ne.s32.totalorder %s93, %s95
      %p102 = scmp.eq.s32.totalorder %s20, 1
      %p103 = por %p101, %p102
      %p104 = scmp.ne.s32.totalorder %s95, %s96
      %p105 = scmp.eq.s32.totalorder %s20, 0
      %p106 = por %p104, %p105
      %p107 = scmp.ne.s32.totalorder %s95, %s96
      %p108 = scmp.eq.s32.totalorder %s21, 1
      %p109 = por %p107, %p108
      %p111 = scmp.ne.s32.totalorder %s96, %s110
      %p112 = scmp.eq.s32.totalorder %s21, 0
      %p113 = por %p111, %p112
      %s114 = ssub.s32 %s22, %s41
      %s115 = ssub.s32 %s23, %s37
      %s116 = sor.u32 %s114, %s115
      %s117 = ssub.s32 %s24, %s33
      %s118 = sor.u32 %s116, %s117
      %p119 = scmp.eq.s32.totalorder %s118, 0
      %s121 = sadd.s32 %s120, 1
      %s122 = scalar_select %p119, %s120, %s121
      %p125 = pneg %p119
      %p126 = scmp.eq.s32.totalorder %s15, 1
      %p127 = por %p125, %p126
      %p128 = scmp.ne.s32.totalorder %s120, %s123
      %p129 = scmp.eq.s32.totalorder %s15, 0
      %p130 = por %p128, %p129
      %p131 = scmp.ne.s32.totalorder %s120, %s123
      %p132 = scmp.eq.s32.totalorder %s20, 1
      %p133 = por %p131, %p132
      %p134 = scmp.ne.s32.totalorder %s123, %s124
      %p135 = scmp.eq.s32.totalorder %s20, 0
      %p136 = por %p134, %p135
      %p137 = scmp.ne.s32.totalorder %s123, %s124
      %p138 = scmp.eq.s32.totalorder %s21, 1
      %p139 = por %p137, %p138
      %p141 = scmp.ne.s32.totalorder %s124, %s140
      %p142 = scmp.eq.s32.totalorder %s21, 0
      %p143 = por %p141, %p142
      %p144 = scmp.le.s32.totalorder 1, %s15
      %p145 = scmp.lt.s32.totalorder %s15, 3
      %p146 = pnand %p144, %p145
      %p147 = pneg %p146
      // Predicated region
      $region9: #{tpu_custom_call.1} parent=5 // pred_check
        _
      $region10: #{tpu_custom_call.1} parent=5 // pred_check_branch
        %149 = sbr.rel (%p146) target = $region12
      $region11: #{tpu_custom_call.1} parent=5 // pred_region
        %s150 = ssub.s32 %s15, 1
        // Predicated region
        $region13: #{tpu_custom_call.1} parent=11 // pred_check
          %p151 = pneg %p85
        $region14: #{tpu_custom_call.1} parent=11 // pred_check_branch
          %153 = sbr.rel (%p151) target = $region16
        $region15: #{tpu_custom_call.1} parent=11 // pred_region
          _
        $region16: #{tpu_custom_call.1} parent=11 // pred_fallthru
          _
        // Predicated region
        $region17: #{tpu_custom_call.1} parent=11 // pred_check
          %p154 = pneg %p106
        $region18: #{tpu_custom_call.1} parent=11 // pred_check_branch
          %156 = sbr.rel (%p154) target = $region20
        $region19: #{tpu_custom_call.1} parent=11 // pred_region
          _
        $region20: #{tpu_custom_call.1} parent=11 // pred_fallthru
          _
      $region12: #{tpu_custom_call.1} parent=5 // pred_fallthru
        _
      %p157 = scmp.lt.s32.totalorder %s15, 2
      // Predicated region
      $region21: #{tpu_custom_call.1} parent=5 // pred_check
        %p158 = pneg %p157
      $region22: #{tpu_custom_call.1} parent=5 // pred_check_branch
        %160 = sbr.rel (%p158) target = $region24
      $region23: #{tpu_custom_call.1} parent=5 // pred_region
        // Predicated region
        $region25: #{tpu_custom_call.1} parent=23 // pred_check
          %p161 = pneg %p58
        $region26: #{tpu_custom_call.1} parent=23 // pred_check_branch
          %163 = sbr.rel (%p161) target = $region28
        $region27: #{tpu_custom_call.1} parent=23 // pred_region
          %s164 = sand.u32 %s48, 1
          %s165 = scalar_lea.sflag [#allocation3], %s164
          %s166 = sand.u32 %s48, 1
          %s167 = smul.addr %s166, 256
          %s168 = scalar_lea.vmem [#allocation2], %s167
          %s169 = smul.u32 16, %s23
          %s170 = smul.u32 2, %s24
          %s172 = ssub.s32 4096, 4096
          %173 = vsyncadd %s165, %s172
          %s174 = smul.addr %s169, 2
          %s175 = sadd.s32 %s170, %s174
          %s176 = smul.addr %s22, 32
          %s177 = sadd.s32 %s175, %s176
          %s178 = smul.addr %s177, 128
          %s179 = scalar_lea.hbm %s0, %s178
          %s180 = sshll.u32 %s168, 4
          %s181 = int_to_ptr.vmem [resolvable:$true] %s180
          %186 = dma.hbm_to_vmem [thread:$0]  %s179, 4096, %s181, %s165, 128, 128, 8
        $region28: #{tpu_custom_call.1} parent=23 // pred_fallthru
          _
      $region24: #{tpu_custom_call.1} parent=5 // pred_fallthru
        _
      %p187 = scmp.le.s32.totalorder 1, %s15
      %p188 = scmp.lt.s32.totalorder %s15, 3
      %p189 = pnand %p187, %p188
      %p190 = pneg %p189
      // Predicated region
      $region29: #{tpu_custom_call.1} parent=5 // pred_check
        _
      $region30: #{tpu_custom_call.1} parent=5 // pred_check_branch
        %192 = sbr.rel (%p189) target = $region32
      $region31: #{tpu_custom_call.1} parent=5 // pred_region
        %s193 = ssub.s32 %s15, 1
        %s194 = sand.u32 %s51, 1
        %s195 = scalar_lea.sflag [#allocation3], %s194
        %s196 = sand.u32 %s51, 1
        %s197 = smul.addr %s196, 256
        %s198 = scalar_lea.vmem [#allocation2], %s197
        // Predicated region
        $region33: #{tpu_custom_call.1} parent=31 // pred_check
          %p199 = pneg %p64
        $region34: #{tpu_custom_call.1} parent=31 // pred_check_branch
          %201 = sbr.rel (%p199) target = $region36
        $region35: #{tpu_custom_call.1} parent=31 // pred_region
          %202 = dma.done %s195, 4096
        $region36: #{tpu_custom_call.1} parent=31 // pred_fallthru
          _
        %s203 = sand.u32 %s51, 1
        %s204 = scalar_lea.sflag [#allocation3], %s203
        %s205 = sand.u32 %s51, 1
        %s206 = smul.addr %s205, 256
        %s207 = scalar_lea.vmem [#allocation2], %s206
        %p208 = pneg %p64
        %p209 = pneg %p61
        %p210 = pneg %p85
        %p211 = pneg %p82
        %p212 = pneg %p106
        %p213 = pneg %p103
        %p214 = pneg %p136
        %p215 = pneg %p133
        %s216 = sand.u32 %s123, 1
        %s217 = scalar_lea.sflag [#allocation4], %s216
        %s218 = sand.u32 %s123, 1
        %s219 = smul.addr %s218, 256
        %s220 = scalar_lea.vmem [#allocation5], %s219
        %s221 = smul.u32 16, %s26
        %s222 = smul.u32 2, %s27
        %s223 = smul.u32 16, %s26
        %s224 = smul.u32 2, %s27
        %v226 = vld [vmem:[%s198] sm:$0xff]
        %v227 = vld [vmem:[%s198 + $0x8] sm:$0xff]
        %v228 = vld [vmem:[%s198 + $0x10] sm:$0xff]
        %v229 = vld [vmem:[%s198 + $0x18] sm:$0xff]
        %v230 = vld [vmem:[%s198 + $0x20] sm:$0xff]
        %v231 = vld [vmem:[%s198 + $0x28] sm:$0xff]
        %v232 = vld [vmem:[%s198 + $0x30] sm:$0xff]
        %v233 = vld [vmem:[%s198 + $0x38] sm:$0xff]
        %v234 = vld [vmem:[%s198 + $0x40] sm:$0xff]
        %v235 = vld [vmem:[%s198 + $0x48] sm:$0xff]
        %v236 = vld [vmem:[%s198 + $0x50] sm:$0xff]
        %v237 = vld [vmem:[%s198 + $0x58] sm:$0xff]
        %v238 = vld [vmem:[%s198 + $0x60] sm:$0xff]
        %v239 = vld [vmem:[%s198 + $0x68] sm:$0xff]
        %v240 = vld [vmem:[%s198 + $0x70] sm:$0xff]
        %v241 = vld [vmem:[%s198 + $0x78] sm:$0xff]
        %v242 = vld [vmem:[%s198 + $0x80] sm:$0xff]
        %v243 = vld [vmem:[%s198 + $0x88] sm:$0xff]
        %v244 = vld [vmem:[%s198 + $0x90] sm:$0xff]
        %v245 = vld [vmem:[%s198 + $0x98] sm:$0xff]
        %v246 = vld [vmem:[%s198 + $0xa0] sm:$0xff]
        %v247 = vld [vmem:[%s198 + $0xa8] sm:$0xff]
        %v248 = vld [vmem:[%s198 + $0xb0] sm:$0xff]
        %v249 = vld [vmem:[%s198 + $0xb8] sm:$0xff]
        %v250 = vld [vmem:[%s198 + $0xc0] sm:$0xff]
        %v251 = vld [vmem:[%s198 + $0xc8] sm:$0xff]
        %v252 = vld [vmem:[%s198 + $0xd0] sm:$0xff]
        %v253 = vld [vmem:[%s198 + $0xd8] sm:$0xff]
        %v254 = vld [vmem:[%s198 + $0xe0] sm:$0xff]
        %v255 = vld [vmem:[%s198 + $0xe8] sm:$0xff]
        %v256 = vld [vmem:[%s198 + $0xf0] sm:$0xff]
        %v257 = vld [vmem:[%s198 + $0xf8] sm:$0xff]
        %v258 = vlaneseq
        %v259 = vshrl.u32 %v258, 7
        %v260 = vadd.s32 %v259, 8
        %v261 = vand.u32 %v259, 1
        %v262 = vand.u32 %v260, 1
        %vm263 = vcmp.eq.s32.totalorder %v261, 1
        %vm264 = vcmp.eq.s32.totalorder %v262, 1
        %v265 = vand.u32 %v259, 3
        %v266 = vand.u32 %v260, 3
        %vm267 = vcmp.ge.s32.totalorder %v265, 2
        %vm268 = vcmp.ge.s32.totalorder %v266, 2
        %v269 = vmax.f32 %v226, %v228
        %v270 = vmax.f32 %v227, %v229
        %v271 = vmax.f32 %v230, %v232
        %v272 = vmax.f32 %v231, %v233
        %v273 = vmax.f32 %v234, %v236
        %v274 = vmax.f32 %v235, %v237
        %v275 = vmax.f32 %v238, %v240
        %v276 = vmax.f32 %v239, %v241
        %v277 = vmax.f32 %v242, %v244
        %v278 = vmax.f32 %v243, %v245
        %v279 = vmax.f32 %v246, %v248
        %v280 = vmax.f32 %v247, %v249
        %v281 = vmax.f32 %v250, %v252
        %v282 = vmax.f32 %v251, %v253
        %v283 = vmax.f32 %v254, %v256
        %v284 = vmax.f32 %v255, %v257
        %vm301 = vcmask 1046528
        %v302 = vrot.slane %v269, 1
        %v303 = vrot.slane %v270, 1
        %v304 = vsel %vm301, %v302, %v303
        %v305 = vrot.slane %v271, 1
        %v306 = vrot.slane %v272, 1
        %v307 = vsel %vm301, %v305, %v306
        %v308 = vrot.slane %v273, 1
        %v309 = vrot.slane %v274, 1
        %v310 = vsel %vm301, %v308, %v309
        %v311 = vrot.slane %v275, 1
        %v312 = vrot.slane %v276, 1
        %v313 = vsel %vm301, %v311, %v312
        %v314 = vrot.slane %v277, 1
        %v315 = vrot.slane %v278, 1
        %v316 = vsel %vm301, %v314, %v315
        %v317 = vrot.slane %v279, 1
        %v318 = vrot.slane %v280, 1
        %v319 = vsel %vm301, %v317, %v318
        %v320 = vrot.slane %v281, 1
        %v321 = vrot.slane %v282, 1
        %v322 = vsel %vm301, %v320, %v321
        %v323 = vrot.slane %v283, 1
        %v324 = vrot.slane %v284, 1
        %v325 = vsel %vm301, %v323, %v324
        %v350 = vsel %vm301, %v303, %v302
        %v351 = vsel %vm301, %v306, %v305
        %v352 = vsel %vm301, %v309, %v308
        %v353 = vsel %vm301, %v312, %v311
        %v354 = vsel %vm301, %v315, %v314
        %v355 = vsel %vm301, %v318, %v317
        %v356 = vsel %vm301, %v321, %v320
        %v357 = vsel %vm301, %v324, %v323
        %v358 = vmax.f32 %v269, %v304
        %v359 = vmax.f32 %v270, %v350
        %v360 = vmax.f32 %v271, %v307
        %v361 = vmax.f32 %v272, %v351
        %v362 = vmax.f32 %v273, %v310
        %v363 = vmax.f32 %v274, %v352
        %v364 = vmax.f32 %v275, %v313
        %v365 = vmax.f32 %v276, %v353
        %v366 = vmax.f32 %v277, %v316
        %v367 = vmax.f32 %v278, %v354
        %v368 = vmax.f32 %v279, %v319
        %v369 = vmax.f32 %v280, %v355
        %v370 = vmax.f32 %v281, %v322
        %v371 = vmax.f32 %v282, %v356
        %v372 = vmax.f32 %v283, %v325
        %v373 = vmax.f32 %v284, %v357
        %v382 = vrot.slane %v359, 7
        %v383 = vrot.slane %v361, 7
        %v384 = vrot.slane %v363, 7
        %v385 = vrot.slane %v365, 7
        %v386 = vrot.slane %v367, 7
        %v387 = vrot.slane %v369, 7
        %v388 = vrot.slane %v371, 7
        %v389 = vrot.slane %v373, 7
        %vm406 = vcmask 1040384
        %v407 = vrot.slane %v358, 7
        %v408 = vsel %vm406, %v407, %v382
        %v409 = vrot.slane %v360, 7
        %v410 = vsel %vm406, %v409, %v383
        %v411 = vrot.slane %v362, 7
        %v412 = vsel %vm406, %v411, %v384
        %v413 = vrot.slane %v364, 7
        %v414 = vsel %vm406, %v413, %v385
        %v415 = vrot.slane %v366, 7
        %v416 = vsel %vm406, %v415, %v386
        %v417 = vrot.slane %v368, 7
        %v418 = vsel %vm406, %v417, %v387
        %v419 = vrot.slane %v370, 7
        %v420 = vsel %vm406, %v419, %v388
        %v421 = vrot.slane %v372, 7
        %v422 = vsel %vm406, %v421, %v389
        %v439 = vsel %vm406, %v382, %v407
        %v440 = vsel %vm406, %v383, %v409
        %v441 = vsel %vm406, %v384, %v411
        %v442 = vsel %vm406, %v385, %v413
        %v443 = vsel %vm406, %v386, %v415
        %v444 = vsel %vm406, %v387, %v417
        %v445 = vsel %vm406, %v388, %v419
        %v446 = vsel %vm406, %v389, %v421
        %v447 = vsel %vm263, 1, 0
        %v448 = vsel %vm264, 1, 0
        %vm449 = vcmp.eq.s32.totalorder %v447, 1
        %vm450 = vcmp.eq.s32.totalorder %v448, 1
        %v451 = vsel %vm449, %v439, %v358
        %v452 = vsel %vm450, %v408, %v359
        %v453 = vsel %vm449, %v440, %v360
        %v454 = vsel %vm450, %v410, %v361
        %v455 = vsel %vm449, %v441, %v362
        %v456 = vsel %vm450, %v412, %v363
        %v457 = vsel %vm449, %v442, %v364
        %v458 = vsel %vm450, %v414, %v365
        %v459 = vsel %vm449, %v443, %v366
        %v460 = vsel %vm450, %v416, %v367
        %v461 = vsel %vm449, %v444, %v368
        %v462 = vsel %vm450, %v418, %v369
        %v463 = vsel %vm449, %v445, %v370
        %v464 = vsel %vm450, %v420, %v371
        %v465 = vsel %vm449, %v446, %v372
        %v466 = vsel %vm450, %v422, %v373
        %v467 = vmax.f32 %v451, %v453
        %v468 = vmax.f32 %v452, %v454
        %v469 = vmax.f32 %v455, %v457
        %v470 = vmax.f32 %v456, %v458
        %v471 = vmax.f32 %v459, %v461
        %v472 = vmax.f32 %v460, %v462
        %v473 = vmax.f32 %v463, %v465
        %v474 = vmax.f32 %v464, %v466
        %vm483 = vcmask 1045504
        %v484 = vrot.slane %v467, 2
        %v485 = vrot.slane %v468, 2
        %v486 = vsel %vm483, %v484, %v485
        %v487 = vrot.slane %v469, 2
        %v488 = vrot.slane %v470, 2
        %v489 = vsel %vm483, %v487, %v488
        %v490 = vrot.slane %v471, 2
        %v491 = vrot.slane %v472, 2
        %v492 = vsel %vm483, %v490, %v491
        %v493 = vrot.slane %v473, 2
        %v494 = vrot.slane %v474, 2
        %v495 = vsel %vm483, %v493, %v494
        %v508 = vsel %vm483, %v485, %v484
        %v509 = vsel %vm483, %v488, %v487
        %v510 = vsel %vm483, %v491, %v490
        %v511 = vsel %vm483, %v494, %v493
        %v512 = vmax.f32 %v467, %v486
        %v513 = vmax.f32 %v468, %v508
        %v514 = vmax.f32 %v469, %v489
        %v515 = vmax.f32 %v470, %v509
        %v516 = vmax.f32 %v471, %v492
        %v517 = vmax.f32 %v472, %v510
        %v518 = vmax.f32 %v473, %v495
        %v519 = vmax.f32 %v474, %v511
        %v524 = vrot.slane %v513, 6
        %v525 = vrot.slane %v515, 6
        %v526 = vrot.slane %v517, 6
        %v527 = vrot.slane %v519, 6
        %vm536 = vcmask 1041408
        %v537 = vrot.slane %v512, 6
        %v538 = vsel %vm536, %v537, %v524
        %v539 = vrot.slane %v514, 6
        %v540 = vsel %vm536, %v539, %v525
        %v541 = vrot.slane %v516, 6
        %v542 = vsel %vm536, %v541, %v526
        %v543 = vrot.slane %v518, 6
        %v544 = vsel %vm536, %v543, %v527
        %v553 = vsel %vm536, %v524, %v537
        %v554 = vsel %vm536, %v525, %v539
        %v555 = vsel %vm536, %v526, %v541
        %v556 = vsel %vm536, %v527, %v543
        %v557 = vsel %vm267, 1, 0
        %v558 = vsel %vm268, 1, 0
        %vm559 = vcmp.eq.s32.totalorder %v557, 1
        %vm560 = vcmp.eq.s32.totalorder %v558, 1
        %v561 = vsel %vm559, %v553, %v512
        %v562 = vsel %vm560, %v538, %v513
        %v563 = vsel %vm559, %v554, %v514
        %v564 = vsel %vm560, %v540, %v515
        %v565 = vsel %vm559, %v555, %v516
        %v566 = vsel %vm560, %v542, %v517
        %v567 = vsel %vm559, %v556, %v518
        %v568 = vsel %vm560, %v544, %v519
        %v569 = vpack.c.bf16 %v227, %v226
        %v570 = vpack.c.bf16 %v229, %v228
        %v571 = vpack.c.bf16 %v231, %v230
        %v572 = vpack.c.bf16 %v233, %v232
        %v573 = vpack.c.bf16 %v235, %v234
        %v574 = vpack.c.bf16 %v237, %v236
        %v575 = vpack.c.bf16 %v239, %v238
        %v576 = vpack.c.bf16 %v241, %v240
        %v577 = vpack.c.bf16 %v243, %v242
        %v578 = vpack.c.bf16 %v245, %v244
        %v579 = vpack.c.bf16 %v247, %v246
        %v580 = vpack.c.bf16 %v249, %v248
        %v581 = vpack.c.bf16 %v251, %v250
        %v582 = vpack.c.bf16 %v253, %v252
        %v583 = vpack.c.bf16 %v255, %v254
        %v584 = vpack.c.bf16 %v257, %v256
        %v585 = vpack.c.bf16 %v452, %v451
        %v586 = vpack.c.bf16 %v454, %v453
        %v587 = vpack.c.bf16 %v456, %v455
        %v588 = vpack.c.bf16 %v458, %v457
        %v589 = vpack.c.bf16 %v460, %v459
        %v590 = vpack.c.bf16 %v462, %v461
        %v591 = vpack.c.bf16 %v464, %v463
        %v592 = vpack.c.bf16 %v466, %v465
        %v593 = vpack.c.bf16 %v562, %v561
        %v594 = vpack.c.bf16 %v564, %v563
        %v595 = vpack.c.bf16 %v566, %v565
        %v596 = vpack.c.bf16 %v568, %v567
        %v597 = vld [vmem:[%s2] sm:$0x1]
        %606 = vrot.lane.b32.xlu0 %v585, 16
        %v607 = vpop.permute.xlu0 %606
        %608 = vrot.lane.b32.xlu0 %v586, 16
        %v609 = vpop.permute.xlu0 %608
        %610 = vrot.lane.b32.xlu0 %v587, 16
        %v611 = vpop.permute.xlu0 %610
        %612 = vrot.lane.b32.xlu0 %v588, 16
        %v613 = vpop.permute.xlu0 %612
        %614 = vrot.lane.b32.xlu0 %v589, 16
        %v615 = vpop.permute.xlu0 %614
        %616 = vrot.lane.b32.xlu0 %v590, 16
        %v617 = vpop.permute.xlu0 %616
        %618 = vrot.lane.b32.xlu0 %v591, 16
        %v619 = vpop.permute.xlu0 %618
        %620 = vrot.lane.b32.xlu0 %v592, 16
        %v621 = vpop.permute.xlu0 %620
        %626 = vrot.lane.b32.xlu0 %v593, 32
        %v627 = vpop.permute.xlu0 %626
        %628 = vrot.lane.b32.xlu0 %v594, 32
        %v629 = vpop.permute.xlu0 %628
        %630 = vrot.lane.b32.xlu0 %v595, 32
        %v631 = vpop.permute.xlu0 %630
        %632 = vrot.lane.b32.xlu0 %v596, 32
        %v633 = vpop.permute.xlu0 %632
        %vm634 = vcmask 130048
        %v637 = vsel %vm634, %v569, %v607
        %v639 = vsel %vm634, %v570, %v607
        %v642 = vsel %vm634, %v571, %v609
        %v644 = vsel %vm634, %v572, %v609
        %v647 = vsel %vm634, %v573, %v611
        %v649 = vsel %vm634, %v574, %v611
        %v652 = vsel %vm634, %v575, %v613
        %v654 = vsel %vm634, %v576, %v613
        %v657 = vsel %vm634, %v577, %v615
        %v659 = vsel %vm634, %v578, %v615
        %v662 = vsel %vm634, %v579, %v617
        %v664 = vsel %vm634, %v580, %v617
        %v667 = vsel %vm634, %v581, %v619
        %v669 = vsel %vm634, %v582, %v619
        %v672 = vsel %vm634, %v583, %v621
        %v674 = vsel %vm634, %v584, %v621
        %vm675 = vcmask 261120
        %v677 = vsel %vm675, %v637, %v627
        %v678 = vsel %vm675, %v639, %v627
        %v679 = vsel %vm675, %v642, %v627
        %v680 = vsel %vm675, %v644, %v627
        %v682 = vsel %vm675, %v647, %v629
        %v683 = vsel %vm675, %v649, %v629
        %v684 = vsel %vm675, %v652, %v629
        %v685 = vsel %vm675, %v654, %v629
        %v687 = vsel %vm675, %v657, %v631
        %v688 = vsel %vm675, %v659, %v631
        %v689 = vsel %vm675, %v662, %v631
        %v690 = vsel %vm675, %v664, %v631
        %v692 = vsel %vm675, %v667, %v633
        %v693 = vsel %vm675, %v669, %v633
        %v694 = vsel %vm675, %v672, %v633
        %v695 = vsel %vm675, %v674, %v633
        %v696 = vld [vmem:[%s1] sm:$0xf]
        %v697 = vld [vmem:[%s1 + $0x4] sm:$0xf]
        %v698 = vld [vmem:[%s1 + $0x8] sm:$0xf]
        %v699 = vld [vmem:[%s1 + $0xc] sm:$0xf]
        %v700 = vld [vmem:[%s1 + $0x10] sm:$0xf]
        %v701 = vld [vmem:[%s1 + $0x14] sm:$0xf]
        %v703 = vlaneseq
        %v704 = vshrl.u32 %v703, 7
        %v705 = vsub.s32 0, %v704
        %v706 = vrot.slane %v597, %v705
        %v714 = vunpack.c.l.b16 %v696
        %v715 = vunpack.c.l.b16 %v697
        %v716 = vunpack.c.l.b16 %v698
        %v717 = vunpack.c.l.b16 %v699
        %v718 = vunpack.c.l.b16 %v700
        %v719 = vunpack.c.l.b16 %v701
        %v720 = vpack.c.b16 %v715, %v714
        %v721 = vpack.c.b16 %v717, %v716
        %v722 = vpack.c.b16 %v719, %v718
        %vm726 = vcmask 392192
        %v727 = vsel %vm726, %v677, 0
        %v729 = vsel %vm726, %v678, 0
        %v731 = vsel %vm726, %v679, 0
        %v733 = vsel %vm726, %v680, 0
        %v735 = vsel %vm726, %v682, 0
        %v737 = vsel %vm726, %v683, 0
        %v739 = vsel %vm726, %v684, 0
        %v741 = vsel %vm726, %v685, 0
        %v743 = vsel %vm726, %v687, 0
        %v745 = vsel %vm726, %v688, 0
        %v747 = vsel %vm726, %v689, 0
        %v749 = vsel %vm726, %v690, 0
        %v751 = vsel %vm726, %v692, 0
        %v753 = vsel %vm726, %v693, 0
        %v755 = vsel %vm726, %v694, 0
        %v757 = vsel %vm726, %v695, 0
        %759 = vmatprep.subr.bf16.mxu0 0
        %760 = vmatpush1.bf16.msra.mxu0 %v720
        %761 = vmatprep.subr.bf16.mxu0 0
        %762 = vmatpush1.bf16.msra.mxu0 %v721
        %763 = vmatprep.subr.bf16.mxu0 0
        %764 = vmatpush1.bf16.msra.mxu0 %v722
        %765 = vmatprep.subr.bf16.mxu0 0
        %766 = vmatpush1.bf16.msra.mxu0 0
        %767 = vmatprep.subr.bf16.mxu0 0
        %768 = vmatpush1.bf16.msra.mxu0 0
        %769 = vmatprep.subr.bf16.mxu0 0
        %770 = vmatpush1.bf16.msra.mxu0 0
        %771 = vmatprep.subr.bf16.mxu0 0
        %772 = vmatpush1.bf16.msra.mxu0 0
        %773 = vmatprep.subr.bf16.mxu0 0
        %774 = vmatpush1.bf16.msra.mxu0 0
        %775 = vmatprep.subr.bf16.mxu0 0
        %776 = vmatpush1.bf16.msra.mxu0 0
        %777 = vmatprep.subr.bf16.mxu0 0
        %778 = vmatpush1.bf16.msra.mxu0 0
        %779 = vmatprep.subr.bf16.mxu0 0
        %780 = vmatpush1.bf16.msra.mxu0 0
        %781 = vmatprep.subr.bf16.mxu0 0
        %782 = vmatpush1.bf16.msra.mxu0 0
        %783 = vmatprep.subr.bf16.mxu0 0
        %784 = vmatpush1.bf16.msra.mxu0 0
        %785 = vmatprep.subr.bf16.mxu0 0
        %786 = vmatpush1.bf16.msra.mxu0 0
        %787 = vmatprep.subr.bf16.mxu0 0
        %788 = vmatpush1.bf16.msra.mxu0 0
        %789 = vmatprep.subr.bf16.mxu0 0
        %790 = vmatpush1.bf16.msra.mxu0 0
        %791 = vmatprep.mubr.bf16.mxu0 0
        %792 = vmatmul.mubr.bf16.gmra.mrb[0].mxu0 %v727
        %v793 = vpop.f32.mrb[0].mxu0
        %v794 = vadd.f32 %v706, %v793
        %v795 = vpop.f32.mrb[0].mxu0
        %v796 = vpop.f32.mrb[0].mxu0
        %v797 = vadd.f32 %v706, %v796
        %v798 = vpop.f32.mrb[0].mxu0
        %799 = vmatprep.mubr.bf16.mxu0 0
        %800 = vmatmul.mubr.bf16.gmra.mrb[0].mxu0 %v729
        %v801 = vpop.f32.mrb[0].mxu0
        %v802 = vadd.f32 %v706, %v801
        %v803 = vpop.f32.mrb[0].mxu0
        %v804 = vpop.f32.mrb[0].mxu0
        %v805 = vadd.f32 %v706, %v804
        %v806 = vpop.f32.mrb[0].mxu0
        %807 = vmatprep.mubr.bf16.mxu0 0
        %808 = vmatmul.mubr.bf16.gmra.mrb[0].mxu0 %v731
        %v809 = vpop.f32.mrb[0].mxu0
        %v810 = vadd.f32 %v706, %v809
        %v811 = vpop.f32.mrb[0].mxu0
        %v812 = vpop.f32.mrb[0].mxu0
        %v813 = vadd.f32 %v706, %v812
        %v814 = vpop.f32.mrb[0].mxu0
        %815 = vmatprep.mubr.bf16.mxu0 0
        %816 = vmatmul.mubr.bf16.gmra.mrb[0].mxu0 %v733
        %v817 = vpop.f32.mrb[0].mxu0
        %v818 = vadd.f32 %v706, %v817
        %v819 = vpop.f32.mrb[0].mxu0
        %v820 = vpop.f32.mrb[0].mxu0
        %v821 = vadd.f32 %v706, %v820
        %v822 = vpop.f32.mrb[0].mxu0
        %823 = vmatprep.mubr.bf16.mxu0 0
        %824 = vmatmul.mubr.bf16.gmra.mrb[0].mxu0 %v735
        %v825 = vpop.f32.mrb[0].mxu0
        %v826 = vadd.f32 %v706, %v825
        %v827 = vpop.f32.mrb[0].mxu0
        %v828 = vpop.f32.mrb[0].mxu0
        %v829 = vadd.f32 %v706, %v828
        %v830 = vpop.f32.mrb[0].mxu0
        %831 = vmatprep.mubr.bf16.mxu0 0
        %832 = vmatmul.mubr.bf16.gmra.mrb[0].mxu0 %v737
        %v833 = vpop.f32.mrb[0].mxu0
        %v834 = vadd.f32 %v706, %v833
        %v835 = vpop.f32.mrb[0].mxu0
        %v836 = vpop.f32.mrb[0].mxu0
        %v837 = vadd.f32 %v706, %v836
        %v838 = vpop.f32.mrb[0].mxu0
        %839 = vmatprep.mubr.bf16.mxu0 0
        %840 = vmatmul.mubr.bf16.gmra.mrb[0].mxu0 %v739
        %v841 = vpop.f32.mrb[0].mxu0
        %v842 = vadd.f32 %v706, %v841
        %v843 = vpop.f32.mrb[0].mxu0
        %v844 = vpop.f32.mrb[0].mxu0
        %v845 = vadd.f32 %v706, %v844
        %v846 = vpop.f32.mrb[0].mxu0
        %847 = vmatprep.mubr.bf16.mxu0 0
        %848 = vmatmul.mubr.bf16.gmra.mrb[0].mxu0 %v741
        %v849 = vpop.f32.mrb[0].mxu0
        %v850 = vadd.f32 %v706, %v849
        %v851 = vpop.f32.mrb[0].mxu0
        %v852 = vpop.f32.mrb[0].mxu0
        %v853 = vadd.f32 %v706, %v852
        %v854 = vpop.f32.mrb[0].mxu0
        %855 = vmatprep.mubr.bf16.mxu0 0
        %856 = vmatmul.mubr.bf16.gmra.mrb[0].mxu0 %v743
        %v857 = vpop.f32.mrb[0].mxu0
        %v858 = vadd.f32 %v706, %v857
        %v859 = vpop.f32.mrb[0].mxu0
        %v860 = vpop.f32.mrb[0].mxu0
        %v861 = vadd.f32 %v706, %v860
        %v862 = vpop.f32.mrb[0].mxu0
        %863 = vmatprep.mubr.bf16.mxu0 0
        %864 = vmatmul.mubr.bf16.gmra.mrb[0].mxu0 %v745
        %v865 = vpop.f32.mrb[0].mxu0
        %v866 = vadd.f32 %v706, %v865
        %v867 = vpop.f32.mrb[0].mxu0
        %v868 = vpop.f32.mrb[0].mxu0
        %v869 = vadd.f32 %v706, %v868
        %v870 = vpop.f32.mrb[0].mxu0
        %871 = vmatprep.mubr.bf16.mxu0 0
        %872 = vmatmul.mubr.bf16.gmra.mrb[0].mxu0 %v747
        %v873 = vpop.f32.mrb[0].mxu0
        %v874 = vadd.f32 %v706, %v873
        %v875 = vpop.f32.mrb[0].mxu0
        %v876 = vpop.f32.mrb[0].mxu0
        %v877 = vadd.f32 %v706, %v876
        %v878 = vpop.f32.mrb[0].mxu0
        %879 = vmatprep.mubr.bf16.mxu0 0
        %880 = vmatmul.mubr.bf16.gmra.mrb[0].mxu0 %v749
        %v881 = vpop.f32.mrb[0].mxu0
        %v882 = vadd.f32 %v706, %v881
        %v883 = vpop.f32.mrb[0].mxu0
        %v884 = vpop.f32.mrb[0].mxu0
        %v885 = vadd.f32 %v706, %v884
        %v886 = vpop.f32.mrb[0].mxu0
        %887 = vmatprep.mubr.bf16.mxu0 0
        %888 = vmatmul.mubr.bf16.gmra.mrb[0].mxu0 %v751
        %v889 = vpop.f32.mrb[0].mxu0
        %v890 = vadd.f32 %v706, %v889
        %v891 = vpop.f32.mrb[0].mxu0
        %v892 = vpop.f32.mrb[0].mxu0
        %v893 = vadd.f32 %v706, %v892
        %v894 = vpop.f32.mrb[0].mxu0
        %895 = vmatprep.mubr.bf16.mxu0 0
        %896 = vmatmul.mubr.bf16.gmra.mrb[0].mxu0 %v753
        %v897 = vpop.f32.mrb[0].mxu0
        %v898 = vadd.f32 %v706, %v897
        %v899 = vpop.f32.mrb[0].mxu0
        %v900 = vpop.f32.mrb[0].mxu0
        %v901 = vadd.f32 %v706, %v900
        %v902 = vpop.f32.mrb[0].mxu0
        %903 = vmatprep.mubr.bf16.mxu0 0
        %904 = vmatmul.mubr.bf16.gmra.mrb[0].mxu0 %v755
        %v905 = vpop.f32.mrb[0].mxu0
        %v906 = vadd.f32 %v706, %v905
        %v907 = vpop.f32.mrb[0].mxu0
        %v908 = vpop.f32.mrb[0].mxu0
        %v909 = vadd.f32 %v706, %v908
        %v910 = vpop.f32.mrb[0].mxu0
        %911 = vmatprep.mubr.bf16.mxu0 0
        %912 = vmatmul.mubr.bf16.gmra.mrb[0].mxu0 %v757
        %v913 = vpop.f32.mrb[0].mxu0
        %v914 = vadd.f32 %v706, %v913
        %v915 = vpop.f32.mrb[0].mxu0
        %v916 = vpop.f32.mrb[0].mxu0
        %v917 = vadd.f32 %v706, %v916
        %v918 = vpop.f32.mrb[0].mxu0
        %919 = vdwg.mxu0
        %v920 = vmax.f32 %v794, 0.0
        %v921 = vmax.f32 %v797, 0.0
        %v922 = vmax.f32 %v802, 0.0
        %v923 = vmax.f32 %v805, 0.0
        %v924 = vmax.f32 %v810, 0.0
        %v925 = vmax.f32 %v813, 0.0
        %v926 = vmax.f32 %v818, 0.0
        %v927 = vmax.f32 %v821, 0.0
        %v928 = vmax.f32 %v826, 0.0
        %v929 = vmax.f32 %v829, 0.0
        %v930 = vmax.f32 %v834, 0.0
        %v931 = vmax.f32 %v837, 0.0
        %v932 = vmax.f32 %v842, 0.0
        %v933 = vmax.f32 %v845, 0.0
        %v934 = vmax.f32 %v850, 0.0
        %v935 = vmax.f32 %v853, 0.0
        %v936 = vmax.f32 %v858, 0.0
        %v937 = vmax.f32 %v861, 0.0
        %v938 = vmax.f32 %v866, 0.0
        %v939 = vmax.f32 %v869, 0.0
        %v940 = vmax.f32 %v874, 0.0
        %v941 = vmax.f32 %v877, 0.0
        %v942 = vmax.f32 %v882, 0.0
        %v943 = vmax.f32 %v885, 0.0
        %v944 = vmax.f32 %v890, 0.0
        %v945 = vmax.f32 %v893, 0.0
        %v946 = vmax.f32 %v898, 0.0
        %v947 = vmax.f32 %v901, 0.0
        %v948 = vmax.f32 %v906, 0.0
        %v949 = vmax.f32 %v909, 0.0
        %v950 = vmax.f32 %v914, 0.0
        %v951 = vmax.f32 %v917, 0.0
        %952 = vst.msk [vmem:[%s220] sm:$0xff] %vm634, %v920
        %953 = vst.msk [vmem:[%s220 + $0x8] sm:$0xff] %vm634, %v921
        %954 = vst.msk [vmem:[%s220 + $0x10] sm:$0xff] %vm634, %v922
        %955 = vst.msk [vmem:[%s220 + $0x18] sm:$0xff] %vm634, %v923
        %956 = vst.msk [vmem:[%s220 + $0x20] sm:$0xff] %vm634, %v924
        %957 = vst.msk [vmem:[%s220 + $0x28] sm:$0xff] %vm634, %v925
        %958 = vst.msk [vmem:[%s220 + $0x30] sm:$0xff] %vm634, %v926
        %959 = vst.msk [vmem:[%s220 + $0x38] sm:$0xff] %vm634, %v927
        %960 = vst.msk [vmem:[%s220 + $0x40] sm:$0xff] %vm634, %v928
        %961 = vst.msk [vmem:[%s220 + $0x48] sm:$0xff] %vm634, %v929
        %962 = vst.msk [vmem:[%s220 + $0x50] sm:$0xff] %vm634, %v930
        %963 = vst.msk [vmem:[%s220 + $0x58] sm:$0xff] %vm634, %v931
        %964 = vst.msk [vmem:[%s220 + $0x60] sm:$0xff] %vm634, %v932
        %965 = vst.msk [vmem:[%s220 + $0x68] sm:$0xff] %vm634, %v933
        %966 = vst.msk [vmem:[%s220 + $0x70] sm:$0xff] %vm634, %v934
        %967 = vst.msk [vmem:[%s220 + $0x78] sm:$0xff] %vm634, %v935
        %968 = vst.msk [vmem:[%s220 + $0x80] sm:$0xff] %vm634, %v936
        %969 = vst.msk [vmem:[%s220 + $0x88] sm:$0xff] %vm634, %v937
        %970 = vst.msk [vmem:[%s220 + $0x90] sm:$0xff] %vm634, %v938
        %971 = vst.msk [vmem:[%s220 + $0x98] sm:$0xff] %vm634, %v939
        %972 = vst.msk [vmem:[%s220 + $0xa0] sm:$0xff] %vm634, %v940
        %973 = vst.msk [vmem:[%s220 + $0xa8] sm:$0xff] %vm634, %v941
        %974 = vst.msk [vmem:[%s220 + $0xb0] sm:$0xff] %vm634, %v942
        %975 = vst.msk [vmem:[%s220 + $0xb8] sm:$0xff] %vm634, %v943
        %976 = vst.msk [vmem:[%s220 + $0xc0] sm:$0xff] %vm634, %v944
        %977 = vst.msk [vmem:[%s220 + $0xc8] sm:$0xff] %vm634, %v945
        %978 = vst.msk [vmem:[%s220 + $0xd0] sm:$0xff] %vm634, %v946
        %979 = vst.msk [vmem:[%s220 + $0xd8] sm:$0xff] %vm634, %v947
        %980 = vst.msk [vmem:[%s220 + $0xe0] sm:$0xff] %vm634, %v948
        %981 = vst.msk [vmem:[%s220 + $0xe8] sm:$0xff] %vm634, %v949
        %982 = vst.msk [vmem:[%s220 + $0xf0] sm:$0xff] %vm634, %v950
        %983 = vst.msk [vmem:[%s220 + $0xf8] sm:$0xff] %vm634, %v951
        %s984 = sand.u32 %s123, 1
        %s985 = scalar_lea.sflag [#allocation4], %s984
        %s986 = sand.u32 %s123, 1
        %s987 = smul.addr %s986, 256
        %s988 = scalar_lea.vmem [#allocation5], %s987
        // Predicated region
        $region37: #{tpu_custom_call.1} parent=31 // pred_check
          %p989 = pneg %p133
        $region38: #{tpu_custom_call.1} parent=31 // pred_check_branch
          %991 = sbr.rel (%p989) target = $region40
        $region39: #{tpu_custom_call.1} parent=31 // pred_region
          %s992 = smul.u32 16, %s26
          %s993 = smul.u32 2, %s27
          %s995 = ssub.s32 4096, 4096
          %996 = vsyncadd %s985, %s995
          %s997 = smul.addr %s992, 2
          %s998 = sadd.s32 %s993, %s997
          %s999 = smul.addr %s25, 32
          %s1000 = sadd.s32 %s998, %s999
          %s1001 = smul.addr %s1000, 128
          %s1002 = scalar_lea.hbm %s3, %s1001
          %s1003 = sshll.u32 %s988, 4
          %s1004 = int_to_ptr.vmem [resolvable:$true] %s1003
          %1009 = dma.vmem_to_hbm [thread:$0]  %s1004, 4096, %s1002, %s985, 128, 128, 8
        $region40: #{tpu_custom_call.1} parent=31 // pred_fallthru
          _
      $region32: #{tpu_custom_call.1} parent=5 // pred_fallthru
        _
      %p1010 = scmp.le.s32.totalorder 2, %s15
      // Predicated region
      $region41: #{tpu_custom_call.1} parent=5 // pred_check
        %p1011 = pneg %p1010
      $region42: #{tpu_custom_call.1} parent=5 // pred_check_branch
        %1013 = sbr.rel (%p1011) target = $region44
      $region43: #{tpu_custom_call.1} parent=5 // pred_region
        %s1014 = ssub.s32 %s15, 2
        // Predicated region
        $region45: #{tpu_custom_call.1} parent=43 // pred_check
          %p1015 = pneg %p139
        $region46: #{tpu_custom_call.1} parent=43 // pred_check_branch
          %1017 = sbr.rel (%p1015) target = $region48
        $region47: #{tpu_custom_call.1} parent=43 // pred_region
          %s1018 = sand.u32 %s124, 1
          %s1019 = scalar_lea.sflag [#allocation4], %s1018
          %s1020 = sand.u32 %s124, 1
          %s1021 = smul.addr %s1020, 256
          %s1022 = scalar_lea.vmem [#allocation5], %s1021
          %1023 = dma.done %s1019, 4096
        $region48: #{tpu_custom_call.1} parent=43 // pred_fallthru
          _
      $region44: #{tpu_custom_call.1} parent=5 // pred_fallthru
        _
    $region6: #{tpu_custom_call.1} parent=1 // loop_footer
      %s19 = sadd.s32 1, %s15
    $region7: #{tpu_custom_call.1} parent=1 // loop_footer_branch
      %14 = sbr.rel target = $region3
    $region8: #{tpu_custom_call.1} parent=1 // loop_exit
      _
    %1024 = vsyncpa [#allocation3], 1
    %s1025 = scalar_lea.sflag [#allocation3], 1
    %1026 = vsyncpa %s1025, 1
    %1027 = vsyncpa [#allocation4], 1
    %s1028 = scalar_lea.sflag [#allocation4], 1
    %1029 = vsyncpa %s1028, 1

// kernel: tpu_custom_call.1
$region0: #{tpu_custom_call.1}
  #allocation0 [shape = 'u32[]', space=smem, size = 0x4, offset = 0x4, fixed_abs, tag = 'smem constant byte address 0x4 - core index']
  #allocation1 [shape = 'u32[144,128]{1,0:T(1,128)}', space=vmem, size = 0x12000, scoped, tag = 'internal scratch']
  %s0 = inlined_call_operand.hbm [shape: f32[2,16,16,16], index: 0, kind: input, shape index: {}]
  %s1 = inlined_call_operand.vmem [shape: bf16[48,16], index: 1, kind: input, shape index: {}]
  %s2 = inlined_call_operand.vmem [shape: f32[1,16], index: 2, kind: input, shape index: {}]
  %s3 = inlined_call_operand.hbm [shape: f32[2,16,16,16], index: 3, kind: output, shape index: {}]
  %s4 = sld [smem:[#allocation0]]
  $region49: #{tpu_custom_call.1} parent=0
    _
  %s6 = ssub.s32 1, %s4
  %s7 = scalar_select 0, %s6, %s4
  $region1: #{tpu_custom_call.1} parent=0
    #allocation2 [shape = 'u8[262144]{0}', space=vmem, size = 0x40000, scoped, tag = 'input window, operand 0']
    #allocation3 [shape = 's32[2]{0}', space=sflag, size = 0x8, scoped, tag = 'scoped memory for tpu_custom_call.1']
    #allocation4 [shape = 's32[2]{0}', space=sflag, size = 0x8, scoped, tag = 'scoped memory for tpu_custom_call.1']
    #allocation5 [shape = 'u8[262144]{0}', space=vmem, size = 0x40000, scoped, tag = 'output window, operand 0']
    %8 = vsyncpa [#allocation3], 0
    %s9 = scalar_lea.sflag [#allocation3], 1
    %10 = vsyncpa %s9, 0
    %11 = vsyncpa [#allocation4], 0
    %s12 = scalar_lea.sflag [#allocation4], 1
    %13 = vsyncpa %s12, 0
    loop: start=0, step=1, limit=4
    $region2: #{tpu_custom_call.1} parent=1 // loop_pre_header
      _
    $region3: #{tpu_custom_call.1} parent=1 // loop_header
      %s15 = sphi 0, %s19
      %p16 = scmp.ge.s32.totalorder %s15, 4
      %s22 = sphi 0, %s41
      %s23 = sphi 0, %s37
      %s24 = sphi 0, %s33
      %s25 = sphi 0, %s22
      %s26 = sphi 0, %s23
      %s27 = sphi 0, %s24
      %s28 = sphi 0, %s25
      %s29 = sphi 0, %s26
      %s30 = sphi 0, %s27
      %s48 = sphi 0, %s50
      %s51 = sphi 0, %s48
      %s52 = sphi 0, %s51
      %s68 = sphi 0, %s52
      %s72 = sphi 0, %s72
      %s74 = sphi 0, %s72
      %s75 = sphi 0, %s74
      %s89 = sphi 0, %s75
      %s93 = sphi 0, %s93
      %s95 = sphi 0, %s93
      %s96 = sphi 0, %s95
      %s110 = sphi 0, %s96
      %s120 = sphi 0, %s122
      %s123 = sphi 0, %s120
      %s124 = sphi 0, %s123
      %s140 = sphi 0, %s124
    $region4: #{tpu_custom_call.1} parent=1 // loop_header_branch
      %18 = sbr.rel (%p16) target = $region8
    $region5: #{tpu_custom_call.1} parent=1 // loop_body
      %s20 = ssub.s32 %s15, 1
      %s21 = ssub.s32 %s15, 2
      %s31 = sadd.s32 1, %s24
      %p32 = scmp.ge.s32.totalorder %s31, 1
      %s33 = scalar_select %p32, 0, %s31
      %s34 = sadd.s32 1, %s23
      %s35 = scalar_select %p32, %s34, %s23
      %p36 = scmp.ge.s32.totalorder %s35, 1
      %s37 = scalar_select %p36, 0, %s35
      %s38 = sadd.s32 1, %s22
      %s39 = scalar_select %p36, %s38, %s22
      %p40 = scmp.ge.s32.totalorder %s39, 2
      %s41 = scalar_select %p40, 0, %s39
      %s42 = ssub.s32 %s22, %s41
      %s43 = ssub.s32 %s23, %s37
      %s44 = sor.u32 %s42, %s43
      %s45 = ssub.s32 %s24, %s33
      %s46 = sor.u32 %s44, %s45
      %p47 = scmp.eq.s32.totalorder %s46, 0
      %s49 = sadd.s32 %s48, 1
      %s50 = scalar_select %p47, %s48, %s49
      %p53 = pneg %p47
      %p54 = scmp.eq.s32.totalorder %s15, 1
      %p55 = por %p53, %p54
      %p56 = scmp.ne.s32.totalorder %s48, %s51
      %p57 = scmp.eq.s32.totalorder %s15, 0
      %p58 = por %p56, %p57
      %p59 = scmp.ne.s32.totalorder %s48, %s51
      %p60 = scmp.eq.s32.totalorder %s20, 1
      %p61 = por %p59, %p60
      %p62 = scmp.ne.s32.totalorder %s51, %s52
      %p63 = scmp.eq.s32.totalorder %s20, 0
      %p64 = por %p62, %p63
      %p65 = scmp.ne.s32.totalorder %s51, %s52
      %p66 = scmp.eq.s32.totalorder %s21, 1
      %p67 = por %p65, %p66
      %p69 = scmp.ne.s32.totalorder %s52, %s68
      %p70 = scmp.eq.s32.totalorder %s21, 0
      %p71 = por %p69, %p70
      %s73 = sadd.s32 %s72, 1
      %p76 = scmp.eq.s32.totalorder %s15, 1
      %p77 = scmp.ne.s32.totalorder %s72, %s74
      %p78 = scmp.eq.s32.totalorder %s15, 0
      %p79 = por %p77, %p78
      %p80 = scmp.ne.s32.totalorder %s72, %s74
      %p81 = scmp.eq.s32.totalorder %s20, 1
      %p82 = por %p80, %p81
      %p83 = scmp.ne.s32.totalorder %s74, %s75
      %p84 = scmp.eq.s32.totalorder %s20, 0
      %p85 = por %p83, %p84
      %p86 = scmp.ne.s32.totalorder %s74, %s75
      %p87 = scmp.eq.s32.totalorder %s21, 1
      %p88 = por %p86, %p87
      %p90 = scmp.ne.s32.totalorder %s75, %s89
      %p91 = scmp.eq.s32.totalorder %s21, 0
      %p92 = por %p90, %p91
      %s94 = sadd.s32 %s93, 1
      %p97 = scmp.eq.s32.totalorder %s15, 1
      %p98 = scmp.ne.s32.totalorder %s93, %s95
      %p99 = scmp.eq.s32.totalorder %s15, 0
      %p100 = por %p98, %p99
      %p101 = scmp.ne.s32.totalorder %s93, %s95
      %p102 = scmp.eq.s32.totalorder %s20, 1
      %p103 = por %p101, %p102
      %p104 = scmp.ne.s32.totalorder %s95, %s96
      %p105 = scmp.eq.s32.totalorder %s20, 0
      %p106 = por %p104, %p105
      %p107 = scmp.ne.s32.totalorder %s95, %s96
      %p108 = scmp.eq.s32.totalorder %s21, 1
      %p109 = por %p107, %p108
      %p111 = scmp.ne.s32.totalorder %s96, %s110
      %p112 = scmp.eq.s32.totalorder %s21, 0
      %p113 = por %p111, %p112
      %s114 = ssub.s32 %s22, %s41
      %s115 = ssub.s32 %s23, %s37
      %s116 = sor.u32 %s114, %s115
      %s117 = ssub.s32 %s24, %s33
      %s118 = sor.u32 %s116, %s117
      %p119 = scmp.eq.s32.totalorder %s118, 0
      %s121 = sadd.s32 %s120, 1
      %s122 = scalar_select %p119, %s120, %s121
      %p125 = pneg %p119
      %p126 = scmp.eq.s32.totalorder %s15, 1
      %p127 = por %p125, %p126
      %p128 = scmp.ne.s32.totalorder %s120, %s123
      %p129 = scmp.eq.s32.totalorder %s15, 0
      %p130 = por %p128, %p129
      %p131 = scmp.ne.s32.totalorder %s120, %s123
      %p132 = scmp.eq.s32.totalorder %s20, 1
      %p133 = por %p131, %p132
      %p134 = scmp.ne.s32.totalorder %s123, %s124
      %p135 = scmp.eq.s32.totalorder %s20, 0
      %p136 = por %p134, %p135
      %p137 = scmp.ne.s32.totalorder %s123, %s124
      %p138 = scmp.eq.s32.totalorder %s21, 1
      %p139 = por %p137, %p138
      %p141 = scmp.ne.s32.totalorder %s124, %s140
      %p142 = scmp.eq.s32.totalorder %s21, 0
      %p143 = por %p141, %p142
      %p144 = scmp.le.s32.totalorder 1, %s15
      %p145 = scmp.lt.s32.totalorder %s15, 3
      %p146 = pnand %p144, %p145
      %p147 = pneg %p146
      // Predicated region
      $region9: #{tpu_custom_call.1} parent=5 // pred_check
        _
      $region10: #{tpu_custom_call.1} parent=5 // pred_check_branch
        %149 = sbr.rel (%p146) target = $region12
      $region11: #{tpu_custom_call.1} parent=5 // pred_region
        %s150 = ssub.s32 %s15, 1
        // Predicated region
        $region13: #{tpu_custom_call.1} parent=11 // pred_check
          %p151 = pneg %p85
        $region14: #{tpu_custom_call.1} parent=11 // pred_check_branch
          %153 = sbr.rel (%p151) target = $region16
        $region15: #{tpu_custom_call.1} parent=11 // pred_region
          _
        $region16: #{tpu_custom_call.1} parent=11 // pred_fallthru
          _
        // Predicated region
        $region17: #{tpu_custom_call.1} parent=11 // pred_check
          %p154 = pneg %p106
        $region18: #{tpu_custom_call.1} parent=11 // pred_check_branch
          %156 = sbr.rel (%p154) target = $region20
        $region19: #{tpu_custom_call.1} parent=11 // pred_region
          _
        $region20: #{tpu_custom_call.1} parent=11 // pred_fallthru
          _
      $region12: #{tpu_custom_call.1} parent=5 // pred_fallthru
        _
      %p157 = scmp.lt.s32.totalorder %s15, 2
      // Predicated region
      $region21: #{tpu_custom_call.1} parent=5 // pred_check
        %p158 = pneg %p157
      $region22: #{tpu_custom_call.1} parent=5 // pred_check_branch
        %160 = sbr.rel (%p158) target = $region24
      $region23: #{tpu_custom_call.1} parent=5 // pred_region
        // Predicated region
        $region25: #{tpu_custom_call.1} parent=23 // pred_check
          %p161 = pneg %p58
        $region26: #{tpu_custom_call.1} parent=23 // pred_check_branch
          %163 = sbr.rel (%p161) target = $region28
        $region27: #{tpu_custom_call.1} parent=23 // pred_region
          %s164 = sand.u32 %s48, 1
          %s165 = scalar_lea.sflag [#allocation3], %s164
          %s166 = sand.u32 %s48, 1
          %s167 = smul.addr %s166, 256
          %s168 = scalar_lea.vmem [#allocation2], %s167
          %s169 = smul.u32 16, %s23
          %s170 = smul.u32 2, %s24
          %s172 = ssub.s32 4096, 4096
          %173 = vsyncadd %s165, %s172
          %s174 = smul.addr %s169, 2
          %s175 = sadd.s32 %s170, %s174
          %s176 = smul.addr %s22, 32
          %s177 = sadd.s32 %s175, %s176
          %s178 = smul.addr %s177, 128
          %s179 = scalar_lea.hbm %s0, %s178
          %s180 = sshll.u32 %s168, 4
          %s181 = int_to_ptr.vmem [resolvable:$true] %s180
          %186 = dma.hbm_to_vmem [thread:$0]  %s179, 4096, %s181, %s165, 128, 128, 8
        $region28: #{tpu_custom_call.1} parent=23 // pred_fallthru
          _
      $region24: #{tpu_custom_call.1} parent=5 // pred_fallthru
        _
      %p187 = scmp.le.s32.totalorder 1, %s15
      %p188 = scmp.lt.s32.totalorder %s15, 3
      %p189 = pnand %p187, %p188
      %p190 = pneg %p189
      // Predicated region
      $region29: #{tpu_custom_call.1} parent=5 // pred_check
        _
      $region30: #{tpu_custom_call.1} parent=5 // pred_check_branch
        %192 = sbr.rel (%p189) target = $region32
      $region31: #{tpu_custom_call.1} parent=5 // pred_region
        %s193 = ssub.s32 %s15, 1
        %s194 = sand.u32 %s51, 1
        %s195 = scalar_lea.sflag [#allocation3], %s194
        %s196 = sand.u32 %s51, 1
        %s197 = smul.addr %s196, 256
        %s198 = scalar_lea.vmem [#allocation2], %s197
        // Predicated region
        $region33: #{tpu_custom_call.1} parent=31 // pred_check
          %p199 = pneg %p64
        $region34: #{tpu_custom_call.1} parent=31 // pred_check_branch
          %201 = sbr.rel (%p199) target = $region36
        $region35: #{tpu_custom_call.1} parent=31 // pred_region
          %202 = dma.done %s195, 4096
        $region36: #{tpu_custom_call.1} parent=31 // pred_fallthru
          _
        %s203 = sand.u32 %s51, 1
        %s204 = scalar_lea.sflag [#allocation3], %s203
        %s205 = sand.u32 %s51, 1
        %s206 = smul.addr %s205, 256
        %s207 = scalar_lea.vmem [#allocation2], %s206
        %p208 = pneg %p64
        %p209 = pneg %p61
        %p210 = pneg %p85
        %p211 = pneg %p82
        %p212 = pneg %p106
        %p213 = pneg %p103
        %p214 = pneg %p136
        %p215 = pneg %p133
        %s216 = sand.u32 %s123, 1
        %s217 = scalar_lea.sflag [#allocation4], %s216
        %s218 = sand.u32 %s123, 1
        %s219 = smul.addr %s218, 256
        %s220 = scalar_lea.vmem [#allocation5], %s219
        %s221 = smul.u32 16, %s26
        %s222 = smul.u32 2, %s27
        %s223 = smul.u32 16, %s26
        %s224 = smul.u32 2, %s27
        %v226 = vld [vmem:[%s198] sm:$0xff]
        %v227 = vld [vmem:[%s198 + $0x8] sm:$0xff]
        %v228 = vld [vmem:[%s198 + $0x10] sm:$0xff]
        %v229 = vld [vmem:[%s198 + $0x18] sm:$0xff]
        %v230 = vld [vmem:[%s198 + $0x20] sm:$0xff]
        %v231 = vld [vmem:[%s198 + $0x28] sm:$0xff]
        %v232 = vld [vmem:[%s198 + $0x30] sm:$0xff]
        %v233 = vld [vmem:[%s198 + $0x38] sm:$0xff]
        %v234 = vld [vmem:[%s198 + $0x40] sm:$0xff]
        %v235 = vld [vmem:[%s198 + $0x48] sm:$0xff]
        %v236 = vld [vmem:[%s198 + $0x50] sm:$0xff]
        %v237 = vld [vmem:[%s198 + $0x58] sm:$0xff]
        %v238 = vld [vmem:[%s198 + $0x60] sm:$0xff]
        %v239 = vld [vmem:[%s198 + $0x68] sm:$0xff]
        %v240 = vld [vmem:[%s198 + $0x70] sm:$0xff]
        %v241 = vld [vmem:[%s198 + $0x78] sm:$0xff]
        %v242 = vld [vmem:[%s198 + $0x80] sm:$0xff]
        %v243 = vld [vmem:[%s198 + $0x88] sm:$0xff]
        %v244 = vld [vmem:[%s198 + $0x90] sm:$0xff]
        %v245 = vld [vmem:[%s198 + $0x98] sm:$0xff]
        %v246 = vld [vmem:[%s198 + $0xa0] sm:$0xff]
        %v247 = vld [vmem:[%s198 + $0xa8] sm:$0xff]
        %v248 = vld [vmem:[%s198 + $0xb0] sm:$0xff]
        %v249 = vld [vmem:[%s198 + $0xb8] sm:$0xff]
        %v250 = vld [vmem:[%s198 + $0xc0] sm:$0xff]
        %v251 = vld [vmem:[%s198 + $0xc8] sm:$0xff]
        %v252 = vld [vmem:[%s198 + $0xd0] sm:$0xff]
        %v253 = vld [vmem:[%s198 + $0xd8] sm:$0xff]
        %v254 = vld [vmem:[%s198 + $0xe0] sm:$0xff]
        %v255 = vld [vmem:[%s198 + $0xe8] sm:$0xff]
        %v256 = vld [vmem:[%s198 + $0xf0] sm:$0xff]
        %v257 = vld [vmem:[%s198 + $0xf8] sm:$0xff]
        %v258 = vlaneseq
        %v259 = vshrl.u32 %v258, 7
        %v260 = vadd.s32 %v259, 8
        %v261 = vand.u32 %v259, 1
        %v262 = vand.u32 %v260, 1
        %vm263 = vcmp.eq.s32.totalorder %v261, 1
        %vm264 = vcmp.eq.s32.totalorder %v262, 1
        %v265 = vand.u32 %v259, 3
        %v266 = vand.u32 %v260, 3
        %vm267 = vcmp.ge.s32.totalorder %v265, 2
        %vm268 = vcmp.ge.s32.totalorder %v266, 2
        %v269 = vmax.f32 %v226, %v228
        %v270 = vmax.f32 %v227, %v229
        %v271 = vmax.f32 %v230, %v232
        %v272 = vmax.f32 %v231, %v233
        %v273 = vmax.f32 %v234, %v236
        %v274 = vmax.f32 %v235, %v237
        %v275 = vmax.f32 %v238, %v240
        %v276 = vmax.f32 %v239, %v241
        %v277 = vmax.f32 %v242, %v244
        %v278 = vmax.f32 %v243, %v245
        %v279 = vmax.f32 %v246, %v248
        %v280 = vmax.f32 %v247, %v249
        %v281 = vmax.f32 %v250, %v252
        %v282 = vmax.f32 %v251, %v253
        %v283 = vmax.f32 %v254, %v256
        %v284 = vmax.f32 %v255, %v257
        %vm301 = vcmask 1046528
        %v302 = vrot.slane %v269, 1
        %v303 = vrot.slane %v270, 1
        %v304 = vsel %vm301, %v302, %v303
        %v305 = vrot.slane %v271, 1
        %v306 = vrot.slane %v272, 1
        %v307 = vsel %vm301, %v305, %v306
        %v308 = vrot.slane %v273, 1
        %v309 = vrot.slane %v274, 1
        %v310 = vsel %vm301, %v308, %v309
        %v311 = vrot.slane %v275, 1
        %v312 = vrot.slane %v276, 1
        %v313 = vsel %vm301, %v311, %v312
        %v314 = vrot.slane %v277, 1
        %v315 = vrot.slane %v278, 1
        %v316 = vsel %vm301, %v314, %v315
        %v317 = vrot.slane %v279, 1
        %v318 = vrot.slane %v280, 1
        %v319 = vsel %vm301, %v317, %v318
        %v320 = vrot.slane %v281, 1
        %v321 = vrot.slane %v282, 1
        %v322 = vsel %vm301, %v320, %v321
        %v323 = vrot.slane %v283, 1
        %v324 = vrot.slane %v284, 1
        %v325 = vsel %vm301, %v323, %v324
        %v350 = vsel %vm301, %v303, %v302
        %v351 = vsel %vm301, %v306, %v305
        %v352 = vsel %vm301, %v309, %v308
        %v353 = vsel %vm301, %v312, %v311
        %v354 = vsel %vm301, %v315, %v314
        %v355 = vsel %vm301, %v318, %v317
        %v356 = vsel %vm301, %v321, %v320
        %v357 = vsel %vm301, %v324, %v323
        %v358 = vmax.f32 %v269, %v304
        %v359 = vmax.f32 %v270, %v350
        %v360 = vmax.f32 %v271, %v307
        %v361 = vmax.f32 %v272, %v351
        %v362 = vmax.f32 %v273, %v310
        %v363 = vmax.f32 %v274, %v352
        %v364 = vmax.f32 %v275, %v313
        %v365 = vmax.f32 %v276, %v353
        %v366 = vmax.f32 %v277, %v316
        %v367 = vmax.f32 %v278, %v354
        %v368 = vmax.f32 %v279, %v319
        %v369 = vmax.f32 %v280, %v355
        %v370 = vmax.f32 %v281, %v322
        %v371 = vmax.f32 %v282, %v356
        %v372 = vmax.f32 %v283, %v325
        %v373 = vmax.f32 %v284, %v357
        %v382 = vrot.slane %v359, 7
        %v383 = vrot.slane %v361, 7
        %v384 = vrot.slane %v363, 7
        %v385 = vrot.slane %v365, 7
        %v386 = vrot.slane %v367, 7
        %v387 = vrot.slane %v369, 7
        %v388 = vrot.slane %v371, 7
        %v389 = vrot.slane %v373, 7
        %vm406 = vcmask 1040384
        %v407 = vrot.slane %v358, 7
        %v408 = vsel %vm406, %v407, %v382
        %v409 = vrot.slane %v360, 7
        %v410 = vsel %vm406, %v409, %v383
        %v411 = vrot.slane %v362, 7
        %v412 = vsel %vm406, %v411, %v384
        %v413 = vrot.slane %v364, 7
        %v414 = vsel %vm406, %v413, %v385
        %v415 = vrot.slane %v366, 7
        %v416 = vsel %vm406, %v415, %v386
        %v417 = vrot.slane %v368, 7
        %v418 = vsel %vm406, %v417, %v387
        %v419 = vrot.slane %v370, 7
        %v420 = vsel %vm406, %v419, %v388
        %v421 = vrot.slane %v372, 7
        %v422 = vsel %vm406, %v421, %v389
        %v439 = vsel %vm406, %v382, %v407
        %v440 = vsel %vm406, %v383, %v409
        %v441 = vsel %vm406, %v384, %v411
        %v442 = vsel %vm406, %v385, %v413
        %v443 = vsel %vm406, %v386, %v415
        %v444 = vsel %vm406, %v387, %v417
        %v445 = vsel %vm406, %v388, %v419
        %v446 = vsel %vm406, %v389, %v421
        %v447 = vsel %vm263, 1, 0
        %v448 = vsel %vm264, 1, 0
        %vm449 = vcmp.eq.s32.totalorder %v447, 1
        %vm450 = vcmp.eq.s32.totalorder %v448, 1
        %v451 = vsel %vm449, %v439, %v358
        %v452 = vsel %vm450, %v408, %v359
        %v453 = vsel %vm449, %v440, %v360
        %v454 = vsel %vm450, %v410, %v361
        %v455 = vsel %vm449, %v441, %v362
        %v456 = vsel %vm450, %v412, %v363
        %v457 = vsel %vm449, %v442, %v364
        %v458 = vsel %vm450, %v414, %v365
        %v459 = vsel %vm449, %v443, %v366
        %v460 = vsel %vm450, %v416, %v367
        %v461 = vsel %vm449, %v444, %v368
        %v462 = vsel %vm450, %v418, %v369
        %v463 = vsel %vm449, %v445, %v370
        %v464 = vsel %vm450, %v420, %v371
        %v465 = vsel %vm449, %v446, %v372
        %v466 = vsel %vm450, %v422, %v373
        %v467 = vmax.f32 %v451, %v453
        %v468 = vmax.f32 %v452, %v454
        %v469 = vmax.f32 %v455, %v457
        %v470 = vmax.f32 %v456, %v458
        %v471 = vmax.f32 %v459, %v461
        %v472 = vmax.f32 %v460, %v462
        %v473 = vmax.f32 %v463, %v465
        %v474 = vmax.f32 %v464, %v466
        %vm483 = vcmask 1045504
        %v484 = vrot.slane %v467, 2
        %v485 = vrot.slane %v468, 2
        %v486 = vsel %vm483, %v484, %v485
        %v487 = vrot.slane %v469, 2
        %v488 = vrot.slane %v470, 2
        %v489 = vsel %vm483, %v487, %v488
        %v490 = vrot.slane %v471, 2
        %v491 = vrot.slane %v472, 2
        %v492 = vsel %vm483, %v490, %v491
        %v493 = vrot.slane %v473, 2
        %v494 = vrot.slane %v474, 2
        %v495 = vsel %vm483, %v493, %v494
        %v508 = vsel %vm483, %v485, %v484
        %v509 = vsel %vm483, %v488, %v487
        %v510 = vsel %vm483, %v491, %v490
        %v511 = vsel %vm483, %v494, %v493
        %v512 = vmax.f32 %v467, %v486
        %v513 = vmax.f32 %v468, %v508
        %v514 = vmax.f32 %v469, %v489
        %v515 = vmax.f32 %v470, %v509
        %v516 = vmax.f32 %v471, %v492
        %v517 = vmax.f32 %v472, %v510
        %v518 = vmax.f32 %v473, %v495
        %v519 = vmax.f32 %v474, %v511
        %v524 = vrot.slane %v513, 6
        %v525 = vrot.slane %v515, 6
        %v526 = vrot.slane %v517, 6
        %v527 = vrot.slane %v519, 6
        %vm536 = vcmask 1041408
        %v537 = vrot.slane %v512, 6
        %v538 = vsel %vm536, %v537, %v524
        %v539 = vrot.slane %v514, 6
        %v540 = vsel %vm536, %v539, %v525
        %v541 = vrot.slane %v516, 6
        %v542 = vsel %vm536, %v541, %v526
        %v543 = vrot.slane %v518, 6
        %v544 = vsel %vm536, %v543, %v527
        %v553 = vsel %vm536, %v524, %v537
        %v554 = vsel %vm536, %v525, %v539
        %v555 = vsel %vm536, %v526, %v541
        %v556 = vsel %vm536, %v527, %v543
        %v557 = vsel %vm267, 1, 0
        %v558 = vsel %vm268, 1, 0
        %vm559 = vcmp.eq.s32.totalorder %v557, 1
        %vm560 = vcmp.eq.s32.totalorder %v558, 1
        %v561 = vsel %vm559, %v553, %v512
        %v562 = vsel %vm560, %v538, %v513
        %v563 = vsel %vm559, %v554, %v514
        %v564 = vsel %vm560, %v540, %v515
        %v565 = vsel %vm559, %v555, %v516
        %v566 = vsel %vm560, %v542, %v517
        %v567 = vsel %vm559, %v556, %v518
        %v568 = vsel %vm560, %v544, %v519
        %v569 = vpack.c.bf16 %v227, %v226
        %v570 = vpack.c.bf16 %v229, %v228
        %v571 = vpack.c.bf16 %v231, %v230
        %v572 = vpack.c.bf16 %v233, %v232
        %v573 = vpack.c.bf16 %v235, %v234
        %v574 = vpack.c.bf16 %v237, %v236
        %v575 = vpack.c.bf16 %v239, %v238
        %v576 = vpack.c.bf16 %v241, %v240
        %v577 = vpack.c.bf16 %v243, %v242
        %v578 = vpack.c.bf16 %v245, %v244
        %v579 = vpack.c.bf16 %v247, %v246
        %v580 = vpack.c.bf16 %v249, %v248
        %v581 = vpack.c.bf16 %v251, %v250
        %v582 = vpack.c.bf16 %v253, %v252
        %v583 = vpack.c.bf16 %v255, %v254
        %v584 = vpack.c.bf16 %v257, %v256
        %v585 = vpack.c.bf16 %v452, %v451
        %v586 = vpack.c.bf16 %v454, %v453
        %v587 = vpack.c.bf16 %v456, %v455
        %v588 = vpack.c.bf16 %v458, %v457
        %v589 = vpack.c.bf16 %v460, %v459
        %v590 = vpack.c.bf16 %v462, %v461
        %v591 = vpack.c.bf16 %v464, %v463
        %v592 = vpack.c.bf16 %v466, %v465
        %v593 = vpack.c.bf16 %v562, %v561
        %v594 = vpack.c.bf16 %v564, %v563
        %v595 = vpack.c.bf16 %v566, %v565
        %v596 = vpack.c.bf16 %v568, %v567
        %v597 = vld [vmem:[%s2] sm:$0x1]
        %v598 = vld [vmem:[%s1] sm:$0xf]
        %v599 = vld [vmem:[%s1 + $0x4] sm:$0xf]
        %v602 = vunpack.c.l.b16 %v598
        %v603 = vunpack.c.l.b16 %v599
        %v604 = vpack.c.b16 %v603, %v602
        %vm606 = vcmask 130048
        %v608 = vsel %vm606, %v569, 0
        %v611 = vsel %vm606, %v570, 0
        %v614 = vsel %vm606, %v571, 0
        %v617 = vsel %vm606, %v572, 0
        %v620 = vsel %vm606, %v573, 0
        %v623 = vsel %vm606, %v574, 0
        %v626 = vsel %vm606, %v575, 0
        %v629 = vsel %vm606, %v576, 0
        %v632 = vsel %vm606, %v577, 0
        %v635 = vsel %vm606, %v578, 0
        %v638 = vsel %vm606, %v579, 0
        %v641 = vsel %vm606, %v580, 0
        %v644 = vsel %vm606, %v581, 0
        %v647 = vsel %vm606, %v582, 0
        %v650 = vsel %vm606, %v583, 0
        %v653 = vsel %vm606, %v584, 0
        %655 = vmatprep.subr.bf16.mxu0 0
        %656 = vmatpush1.bf16.msra.mxu0 %v604
        %657 = vmatprep.subr.bf16.mxu0 0
        %658 = vmatpush1.bf16.msra.mxu0 0
        %659 = vmatprep.subr.bf16.mxu0 0
        %660 = vmatpush1.bf16.msra.mxu0 0
        %661 = vmatprep.subr.bf16.mxu0 0
        %662 = vmatpush1.bf16.msra.mxu0 0
        %663 = vmatprep.subr.bf16.mxu0 0
        %664 = vmatpush1.bf16.msra.mxu0 0
        %665 = vmatprep.subr.bf16.mxu0 0
        %666 = vmatpush1.bf16.msra.mxu0 0
        %667 = vmatprep.subr.bf16.mxu0 0
        %668 = vmatpush1.bf16.msra.mxu0 0
        %669 = vmatprep.subr.bf16.mxu0 0
        %670 = vmatpush1.bf16.msra.mxu0 0
        %671 = vmatprep.subr.bf16.mxu0 0
        %672 = vmatpush1.bf16.msra.mxu0 0
        %673 = vmatprep.subr.bf16.mxu0 0
        %674 = vmatpush1.bf16.msra.mxu0 0
        %675 = vmatprep.subr.bf16.mxu0 0
        %676 = vmatpush1.bf16.msra.mxu0 0
        %677 = vmatprep.subr.bf16.mxu0 0
        %678 = vmatpush1.bf16.msra.mxu0 0
        %679 = vmatprep.subr.bf16.mxu0 0
        %680 = vmatpush1.bf16.msra.mxu0 0
        %681 = vmatprep.subr.bf16.mxu0 0
        %682 = vmatpush1.bf16.msra.mxu0 0
        %683 = vmatprep.subr.bf16.mxu0 0
        %684 = vmatpush1.bf16.msra.mxu0 0
        %685 = vmatprep.subr.bf16.mxu0 0
        %686 = vmatpush1.bf16.msra.mxu0 0
        %687 = vmatprep.mubr.bf16.mxu0 0
        %688 = vmatmul.mubr.bf16.gmra.mrb[0].mxu0 %v608
        %v689 = vpop.f32.mrb[0].mxu0
        %v690 = vadd.f32 0.0, %v689
        %v691 = vpop.f32.mrb[0].mxu0
        %v692 = vpop.f32.mrb[0].mxu0
        %v693 = vadd.f32 0.0, %v692
        %v694 = vpop.f32.mrb[0].mxu0
        %695 = vmatprep.mubr.bf16.mxu0 0
        %696 = vmatmul.mubr.bf16.gmra.mrb[0].mxu0 %v611
        %v697 = vpop.f32.mrb[0].mxu0
        %v698 = vadd.f32 0.0, %v697
        %v699 = vpop.f32.mrb[0].mxu0
        %v700 = vpop.f32.mrb[0].mxu0
        %v701 = vadd.f32 0.0, %v700
        %v702 = vpop.f32.mrb[0].mxu0
        %703 = vmatprep.mubr.bf16.mxu0 0
        %704 = vmatmul.mubr.bf16.gmra.mrb[0].mxu0 %v614
        %v705 = vpop.f32.mrb[0].mxu0
        %v706 = vadd.f32 0.0, %v705
        %v707 = vpop.f32.mrb[0].mxu0
        %v708 = vpop.f32.mrb[0].mxu0
        %v709 = vadd.f32 0.0, %v708
        %v710 = vpop.f32.mrb[0].mxu0
        %711 = vmatprep.mubr.bf16.mxu0 0
        %712 = vmatmul.mubr.bf16.gmra.mrb[0].mxu0 %v617
        %v713 = vpop.f32.mrb[0].mxu0
        %v714 = vadd.f32 0.0, %v713
        %v715 = vpop.f32.mrb[0].mxu0
        %v716 = vpop.f32.mrb[0].mxu0
        %v717 = vadd.f32 0.0, %v716
        %v718 = vpop.f32.mrb[0].mxu0
        %719 = vmatprep.mubr.bf16.mxu0 0
        %720 = vmatmul.mubr.bf16.gmra.mrb[0].mxu0 %v620
        %v721 = vpop.f32.mrb[0].mxu0
        %v722 = vadd.f32 0.0, %v721
        %v723 = vpop.f32.mrb[0].mxu0
        %v724 = vpop.f32.mrb[0].mxu0
        %v725 = vadd.f32 0.0, %v724
        %v726 = vpop.f32.mrb[0].mxu0
        %727 = vmatprep.mubr.bf16.mxu0 0
        %728 = vmatmul.mubr.bf16.gmra.mrb[0].mxu0 %v623
        %v729 = vpop.f32.mrb[0].mxu0
        %v730 = vadd.f32 0.0, %v729
        %v731 = vpop.f32.mrb[0].mxu0
        %v732 = vpop.f32.mrb[0].mxu0
        %v733 = vadd.f32 0.0, %v732
        %v734 = vpop.f32.mrb[0].mxu0
        %735 = vmatprep.mubr.bf16.mxu0 0
        %736 = vmatmul.mubr.bf16.gmra.mrb[0].mxu0 %v626
        %v737 = vpop.f32.mrb[0].mxu0
        %v738 = vadd.f32 0.0, %v737
        %v739 = vpop.f32.mrb[0].mxu0
        %v740 = vpop.f32.mrb[0].mxu0
        %v741 = vadd.f32 0.0, %v740
        %v742 = vpop.f32.mrb[0].mxu0
        %743 = vmatprep.mubr.bf16.mxu0 0
        %744 = vmatmul.mubr.bf16.gmra.mrb[0].mxu0 %v629
        %v745 = vpop.f32.mrb[0].mxu0
        %v746 = vadd.f32 0.0, %v745
        %v747 = vpop.f32.mrb[0].mxu0
        %v748 = vpop.f32.mrb[0].mxu0
        %v749 = vadd.f32 0.0, %v748
        %v750 = vpop.f32.mrb[0].mxu0
        %751 = vmatprep.mubr.bf16.mxu0 0
        %752 = vmatmul.mubr.bf16.gmra.mrb[0].mxu0 %v632
        %v753 = vpop.f32.mrb[0].mxu0
        %v754 = vadd.f32 0.0, %v753
        %v755 = vpop.f32.mrb[0].mxu0
        %v756 = vpop.f32.mrb[0].mxu0
        %v757 = vadd.f32 0.0, %v756
        %v758 = vpop.f32.mrb[0].mxu0
        %759 = vmatprep.mubr.bf16.mxu0 0
        %760 = vmatmul.mubr.bf16.gmra.mrb[0].mxu0 %v635
        %v761 = vpop.f32.mrb[0].mxu0
        %v762 = vadd.f32 0.0, %v761
        %v763 = vpop.f32.mrb[0].mxu0
        %v764 = vpop.f32.mrb[0].mxu0
        %v765 = vadd.f32 0.0, %v764
        %v766 = vpop.f32.mrb[0].mxu0
        %767 = vmatprep.mubr.bf16.mxu0 0
        %768 = vmatmul.mubr.bf16.gmra.mrb[0].mxu0 %v638
        %v769 = vpop.f32.mrb[0].mxu0
        %v770 = vadd.f32 0.0, %v769
        %v771 = vpop.f32.mrb[0].mxu0
        %v772 = vpop.f32.mrb[0].mxu0
        %v773 = vadd.f32 0.0, %v772
        %v774 = vpop.f32.mrb[0].mxu0
        %775 = vmatprep.mubr.bf16.mxu0 0
        %776 = vmatmul.mubr.bf16.gmra.mrb[0].mxu0 %v641
        %v777 = vpop.f32.mrb[0].mxu0
        %v778 = vadd.f32 0.0, %v777
        %v779 = vpop.f32.mrb[0].mxu0
        %v780 = vpop.f32.mrb[0].mxu0
        %v781 = vadd.f32 0.0, %v780
        %v782 = vpop.f32.mrb[0].mxu0
        %783 = vmatprep.mubr.bf16.mxu0 0
        %784 = vmatmul.mubr.bf16.gmra.mrb[0].mxu0 %v644
        %v785 = vpop.f32.mrb[0].mxu0
        %v786 = vadd.f32 0.0, %v785
        %v787 = vpop.f32.mrb[0].mxu0
        %v788 = vpop.f32.mrb[0].mxu0
        %v789 = vadd.f32 0.0, %v788
        %v790 = vpop.f32.mrb[0].mxu0
        %791 = vmatprep.mubr.bf16.mxu0 0
        %792 = vmatmul.mubr.bf16.gmra.mrb[0].mxu0 %v647
        %v793 = vpop.f32.mrb[0].mxu0
        %v794 = vadd.f32 0.0, %v793
        %v795 = vpop.f32.mrb[0].mxu0
        %v796 = vpop.f32.mrb[0].mxu0
        %v797 = vadd.f32 0.0, %v796
        %v798 = vpop.f32.mrb[0].mxu0
        %799 = vmatprep.mubr.bf16.mxu0 0
        %800 = vmatmul.mubr.bf16.gmra.mrb[0].mxu0 %v650
        %v801 = vpop.f32.mrb[0].mxu0
        %v802 = vadd.f32 0.0, %v801
        %v803 = vpop.f32.mrb[0].mxu0
        %v804 = vpop.f32.mrb[0].mxu0
        %v805 = vadd.f32 0.0, %v804
        %v806 = vpop.f32.mrb[0].mxu0
        %807 = vmatprep.mubr.bf16.mxu0 0
        %808 = vmatmul.mubr.bf16.gmra.mrb[0].mxu0 %v653
        %v809 = vpop.f32.mrb[0].mxu0
        %v810 = vadd.f32 0.0, %v809
        %v811 = vpop.f32.mrb[0].mxu0
        %v812 = vpop.f32.mrb[0].mxu0
        %v813 = vadd.f32 0.0, %v812
        %v814 = vpop.f32.mrb[0].mxu0
        %815 = vdwg.mxu0
        %v816 = vld [vmem:[%s1 + $0x10] sm:$0xf]
        %v817 = vld [vmem:[%s1 + $0x14] sm:$0xf]
        %v819 = vlaneseq
        %v820 = vshrl.u32 %v819, 7
        %v821 = vsub.s32 0, %v820
        %v822 = vrot.slane %v597, %v821
        %v826 = vunpack.c.l.b16 %v816
        %v827 = vunpack.c.l.b16 %v817
        %v828 = vpack.c.b16 %v827, %v826
        %v831 = vsel %vm606, %v593, 0
        %v834 = vsel %vm606, %v594, 0
        %v837 = vsel %vm606, %v595, 0
        %v840 = vsel %vm606, %v596, 0
        %842 = vmatprep.subr.bf16.mxu0 0
        %843 = vmatpush1.bf16.msra.mxu0 %v828
        %844 = vmatprep.subr.bf16.mxu0 0
        %845 = vmatpush1.bf16.msra.mxu0 0
        %846 = vmatprep.subr.bf16.mxu0 0
        %847 = vmatpush1.bf16.msra.mxu0 0
        %848 = vmatprep.subr.bf16.mxu0 0
        %849 = vmatpush1.bf16.msra.mxu0 0
        %850 = vmatprep.subr.bf16.mxu0 0
        %851 = vmatpush1.bf16.msra.mxu0 0
        %852 = vmatprep.subr.bf16.mxu0 0
        %853 = vmatpush1.bf16.msra.mxu0 0
        %854 = vmatprep.subr.bf16.mxu0 0
        %855 = vmatpush1.bf16.msra.mxu0 0
        %856 = vmatprep.subr.bf16.mxu0 0
        %857 = vmatpush1.bf16.msra.mxu0 0
        %858 = vmatprep.subr.bf16.mxu0 0
        %859 = vmatpush1.bf16.msra.mxu0 0
        %860 = vmatprep.subr.bf16.mxu0 0
        %861 = vmatpush1.bf16.msra.mxu0 0
        %862 = vmatprep.subr.bf16.mxu0 0
        %863 = vmatpush1.bf16.msra.mxu0 0
        %864 = vmatprep.subr.bf16.mxu0 0
        %865 = vmatpush1.bf16.msra.mxu0 0
        %866 = vmatprep.subr.bf16.mxu0 0
        %867 = vmatpush1.bf16.msra.mxu0 0
        %868 = vmatprep.subr.bf16.mxu0 0
        %869 = vmatpush1.bf16.msra.mxu0 0
        %870 = vmatprep.subr.bf16.mxu0 0
        %871 = vmatpush1.bf16.msra.mxu0 0
        %872 = vmatprep.subr.bf16.mxu0 0
        %873 = vmatpush1.bf16.msra.mxu0 0
        %874 = vmatprep.mubr.bf16.mxu0 0
        %875 = vmatmul.mubr.bf16.gmra.mrb[0].mxu0 %v831
        %v876 = vpop.f32.mrb[0].mxu0
        %v877 = vadd.f32 %v822, %v876
        %v878 = vpop.f32.mrb[0].mxu0
        %v879 = vpop.f32.mrb[0].mxu0
        %v880 = vadd.f32 %v822, %v879
        %v881 = vpop.f32.mrb[0].mxu0
        %882 = vmatprep.mubr.bf16.mxu0 0
        %883 = vmatmul.mubr.bf16.gmra.mrb[0].mxu0 %v834
        %v884 = vpop.f32.mrb[0].mxu0
        %v885 = vadd.f32 %v822, %v884
        %v886 = vpop.f32.mrb[0].mxu0
        %v887 = vpop.f32.mrb[0].mxu0
        %v888 = vadd.f32 %v822, %v887
        %v889 = vpop.f32.mrb[0].mxu0
        %890 = vmatprep.mubr.bf16.mxu0 0
        %891 = vmatmul.mubr.bf16.gmra.mrb[0].mxu0 %v837
        %v892 = vpop.f32.mrb[0].mxu0
        %v893 = vadd.f32 %v822, %v892
        %v894 = vpop.f32.mrb[0].mxu0
        %v895 = vpop.f32.mrb[0].mxu0
        %v896 = vadd.f32 %v822, %v895
        %v897 = vpop.f32.mrb[0].mxu0
        %898 = vmatprep.mubr.bf16.mxu0 0
        %899 = vmatmul.mubr.bf16.gmra.mrb[0].mxu0 %v840
        %v900 = vpop.f32.mrb[0].mxu0
        %v901 = vadd.f32 %v822, %v900
        %v902 = vpop.f32.mrb[0].mxu0
        %v903 = vpop.f32.mrb[0].mxu0
        %v904 = vadd.f32 %v822, %v903
        %v905 = vpop.f32.mrb[0].mxu0
        %906 = vdwg.mxu0
        %v907 = vld [vmem:[%s1 + $0x8] sm:$0xf]
        %v908 = vld [vmem:[%s1 + $0xc] sm:$0xf]
        %v911 = vunpack.c.l.b16 %v907
        %v912 = vunpack.c.l.b16 %v908
        %v913 = vpack.c.b16 %v912, %v911
        %v916 = vsel %vm606, %v585, 0
        %v919 = vsel %vm606, %v586, 0
        %v922 = vsel %vm606, %v587, 0
        %v925 = vsel %vm606, %v588, 0
        %v928 = vsel %vm606, %v589, 0
        %v931 = vsel %vm606, %v590, 0
        %v934 = vsel %vm606, %v591, 0
        %v937 = vsel %vm606, %v592, 0
        %939 = vmatprep.subr.bf16.mxu0 0
        %940 = vmatpush1.bf16.msra.mxu0 %v913
        %941 = vmatprep.subr.bf16.mxu0 0
        %942 = vmatpush1.bf16.msra.mxu0 0
        %943 = vmatprep.subr.bf16.mxu0 0
        %944 = vmatpush1.bf16.msra.mxu0 0
        %945 = vmatprep.subr.bf16.mxu0 0
        %946 = vmatpush1.bf16.msra.mxu0 0
        %947 = vmatprep.subr.bf16.mxu0 0
        %948 = vmatpush1.bf16.msra.mxu0 0
        %949 = vmatprep.subr.bf16.mxu0 0
        %950 = vmatpush1.bf16.msra.mxu0 0
        %951 = vmatprep.subr.bf16.mxu0 0
        %952 = vmatpush1.bf16.msra.mxu0 0
        %953 = vmatprep.subr.bf16.mxu0 0
        %954 = vmatpush1.bf16.msra.mxu0 0
        %955 = vmatprep.subr.bf16.mxu0 0
        %956 = vmatpush1.bf16.msra.mxu0 0
        %957 = vmatprep.subr.bf16.mxu0 0
        %958 = vmatpush1.bf16.msra.mxu0 0
        %959 = vmatprep.subr.bf16.mxu0 0
        %960 = vmatpush1.bf16.msra.mxu0 0
        %961 = vmatprep.subr.bf16.mxu0 0
        %962 = vmatpush1.bf16.msra.mxu0 0
        %963 = vmatprep.subr.bf16.mxu0 0
        %964 = vmatpush1.bf16.msra.mxu0 0
        %965 = vmatprep.subr.bf16.mxu0 0
        %966 = vmatpush1.bf16.msra.mxu0 0
        %967 = vmatprep.subr.bf16.mxu0 0
        %968 = vmatpush1.bf16.msra.mxu0 0
        %969 = vmatprep.subr.bf16.mxu0 0
        %970 = vmatpush1.bf16.msra.mxu0 0
        %971 = vmatprep.mubr.bf16.mxu0 0
        %972 = vmatmul.mubr.bf16.gmra.mrb[0].mxu0 %v916
        %v973 = vpop.f32.mrb[0].mxu0
        %v974 = vadd.f32 %v877, %v973
        %v975 = vpop.f32.mrb[0].mxu0
        %v976 = vpop.f32.mrb[0].mxu0
        %v977 = vadd.f32 %v880, %v976
        %v978 = vpop.f32.mrb[0].mxu0
        %979 = vmatprep.mubr.bf16.mxu0 0
        %980 = vmatmul.mubr.bf16.gmra.mrb[0].mxu0 %v919
        %v981 = vpop.f32.mrb[0].mxu0
        %v982 = vadd.f32 %v877, %v981
        %v983 = vpop.f32.mrb[0].mxu0
        %v984 = vpop.f32.mrb[0].mxu0
        %v985 = vadd.f32 %v880, %v984
        %v986 = vpop.f32.mrb[0].mxu0
        %987 = vmatprep.mubr.bf16.mxu0 0
        %988 = vmatmul.mubr.bf16.gmra.mrb[0].mxu0 %v922
        %v989 = vpop.f32.mrb[0].mxu0
        %v990 = vadd.f32 %v885, %v989
        %v991 = vpop.f32.mrb[0].mxu0
        %v992 = vpop.f32.mrb[0].mxu0
        %v993 = vadd.f32 %v888, %v992
        %v994 = vpop.f32.mrb[0].mxu0
        %995 = vmatprep.mubr.bf16.mxu0 0
        %996 = vmatmul.mubr.bf16.gmra.mrb[0].mxu0 %v925
        %v997 = vpop.f32.mrb[0].mxu0
        %v998 = vadd.f32 %v885, %v997
        %v999 = vpop.f32.mrb[0].mxu0
        %v1000 = vpop.f32.mrb[0].mxu0
        %v1001 = vadd.f32 %v888, %v1000
        %v1002 = vpop.f32.mrb[0].mxu0
        %1003 = vmatprep.mubr.bf16.mxu0 0
        %1004 = vmatmul.mubr.bf16.gmra.mrb[0].mxu0 %v928
        %v1005 = vpop.f32.mrb[0].mxu0
        %v1006 = vadd.f32 %v893, %v1005
        %v1007 = vpop.f32.mrb[0].mxu0
        %v1008 = vpop.f32.mrb[0].mxu0
        %v1009 = vadd.f32 %v896, %v1008
        %v1010 = vpop.f32.mrb[0].mxu0
        %1011 = vmatprep.mubr.bf16.mxu0 0
        %1012 = vmatmul.mubr.bf16.gmra.mrb[0].mxu0 %v931
        %v1013 = vpop.f32.mrb[0].mxu0
        %v1014 = vadd.f32 %v893, %v1013
        %v1015 = vpop.f32.mrb[0].mxu0
        %v1016 = vpop.f32.mrb[0].mxu0
        %v1017 = vadd.f32 %v896, %v1016
        %v1018 = vpop.f32.mrb[0].mxu0
        %1019 = vmatprep.mubr.bf16.mxu0 0
        %1020 = vmatmul.mubr.bf16.gmra.mrb[0].mxu0 %v934
        %v1021 = vpop.f32.mrb[0].mxu0
        %v1022 = vadd.f32 %v901, %v1021
        %v1023 = vpop.f32.mrb[0].mxu0
        %v1024 = vpop.f32.mrb[0].mxu0
        %v1025 = vadd.f32 %v904, %v1024
        %v1026 = vpop.f32.mrb[0].mxu0
        %1027 = vmatprep.mubr.bf16.mxu0 0
        %1028 = vmatmul.mubr.bf16.gmra.mrb[0].mxu0 %v937
        %v1029 = vpop.f32.mrb[0].mxu0
        %v1030 = vadd.f32 %v901, %v1029
        %v1031 = vpop.f32.mrb[0].mxu0
        %v1032 = vpop.f32.mrb[0].mxu0
        %v1033 = vadd.f32 %v904, %v1032
        %v1034 = vpop.f32.mrb[0].mxu0
        %1035 = vdwg.mxu0
        %v1036 = vadd.f32 %v690, %v974
        %v1037 = vadd.f32 %v693, %v977
        %v1038 = vadd.f32 %v698, %v974
        %v1039 = vadd.f32 %v701, %v977
        %v1040 = vadd.f32 %v706, %v982
        %v1041 = vadd.f32 %v709, %v985
        %v1042 = vadd.f32 %v714, %v982
        %v1043 = vadd.f32 %v717, %v985
        %v1044 = vadd.f32 %v722, %v990
        %v1045 = vadd.f32 %v725, %v993
        %v1046 = vadd.f32 %v730, %v990
        %v1047 = vadd.f32 %v733, %v993
        %v1048 = vadd.f32 %v738, %v998
        %v1049 = vadd.f32 %v741, %v1001
        %v1050 = vadd.f32 %v746, %v998
        %v1051 = vadd.f32 %v749, %v1001
        %v1052 = vadd.f32 %v754, %v1006
        %v1053 = vadd.f32 %v757, %v1009
        %v1054 = vadd.f32 %v762, %v1006
        %v1055 = vadd.f32 %v765, %v1009
        %v1056 = vadd.f32 %v770, %v1014
        %v1057 = vadd.f32 %v773, %v1017
        %v1058 = vadd.f32 %v778, %v1014
        %v1059 = vadd.f32 %v781, %v1017
        %v1060 = vadd.f32 %v786, %v1022
        %v1061 = vadd.f32 %v789, %v1025
        %v1062 = vadd.f32 %v794, %v1022
        %v1063 = vadd.f32 %v797, %v1025
        %v1064 = vadd.f32 %v802, %v1030
        %v1065 = vadd.f32 %v805, %v1033
        %v1066 = vadd.f32 %v810, %v1030
        %v1067 = vadd.f32 %v813, %v1033
        %v1068 = vmax.f32 %v1036, 0.0
        %v1069 = vmax.f32 %v1037, 0.0
        %v1070 = vmax.f32 %v1038, 0.0
        %v1071 = vmax.f32 %v1039, 0.0
        %v1072 = vmax.f32 %v1040, 0.0
        %v1073 = vmax.f32 %v1041, 0.0
        %v1074 = vmax.f32 %v1042, 0.0
        %v1075 = vmax.f32 %v1043, 0.0
        %v1076 = vmax.f32 %v1044, 0.0
        %v1077 = vmax.f32 %v1045, 0.0
        %v1078 = vmax.f32 %v1046, 0.0
        %v1079 = vmax.f32 %v1047, 0.0
        %v1080 = vmax.f32 %v1048, 0.0
        %v1081 = vmax.f32 %v1049, 0.0
        %v1082 = vmax.f32 %v1050, 0.0
        %v1083 = vmax.f32 %v1051, 0.0
        %v1084 = vmax.f32 %v1052, 0.0
        %v1085 = vmax.f32 %v1053, 0.0
        %v1086 = vmax.f32 %v1054, 0.0
        %v1087 = vmax.f32 %v1055, 0.0
        %v1088 = vmax.f32 %v1056, 0.0
        %v1089 = vmax.f32 %v1057, 0.0
        %v1090 = vmax.f32 %v1058, 0.0
        %v1091 = vmax.f32 %v1059, 0.0
        %v1092 = vmax.f32 %v1060, 0.0
        %v1093 = vmax.f32 %v1061, 0.0
        %v1094 = vmax.f32 %v1062, 0.0
        %v1095 = vmax.f32 %v1063, 0.0
        %v1096 = vmax.f32 %v1064, 0.0
        %v1097 = vmax.f32 %v1065, 0.0
        %v1098 = vmax.f32 %v1066, 0.0
        %v1099 = vmax.f32 %v1067, 0.0
        %1100 = vst.msk [vmem:[%s220] sm:$0xff] %vm606, %v1068
        %1101 = vst.msk [vmem:[%s220 + $0x8] sm:$0xff] %vm606, %v1069
        %1102 = vst.msk [vmem:[%s220 + $0x10] sm:$0xff] %vm606, %v1070
        %1103 = vst.msk [vmem:[%s220 + $0x18] sm:$0xff] %vm606, %v1071
        %1104 = vst.msk [vmem:[%s220 + $0x20] sm:$0xff] %vm606, %v1072
        %1105 = vst.msk [vmem:[%s220 + $0x28] sm:$0xff] %vm606, %v1073
        %1106 = vst.msk [vmem:[%s220 + $0x30] sm:$0xff] %vm606, %v1074
        %1107 = vst.msk [vmem:[%s220 + $0x38] sm:$0xff] %vm606, %v1075
        %1108 = vst.msk [vmem:[%s220 + $0x40] sm:$0xff] %vm606, %v1076
        %1109 = vst.msk [vmem:[%s220 + $0x48] sm:$0xff] %vm606, %v1077
        %1110 = vst.msk [vmem:[%s220 + $0x50] sm:$0xff] %vm606, %v1078
        %1111 = vst.msk [vmem:[%s220 + $0x58] sm:$0xff] %vm606, %v1079
        %1112 = vst.msk [vmem:[%s220 + $0x60] sm:$0xff] %vm606, %v1080
        %1113 = vst.msk [vmem:[%s220 + $0x68] sm:$0xff] %vm606, %v1081
        %1114 = vst.msk [vmem:[%s220 + $0x70] sm:$0xff] %vm606, %v1082
        %1115 = vst.msk [vmem:[%s220 + $0x78] sm:$0xff] %vm606, %v1083
        %1116 = vst.msk [vmem:[%s220 + $0x80] sm:$0xff] %vm606, %v1084
        %1117 = vst.msk [vmem:[%s220 + $0x88] sm:$0xff] %vm606, %v1085
        %1118 = vst.msk [vmem:[%s220 + $0x90] sm:$0xff] %vm606, %v1086
        %1119 = vst.msk [vmem:[%s220 + $0x98] sm:$0xff] %vm606, %v1087
        %1120 = vst.msk [vmem:[%s220 + $0xa0] sm:$0xff] %vm606, %v1088
        %1121 = vst.msk [vmem:[%s220 + $0xa8] sm:$0xff] %vm606, %v1089
        %1122 = vst.msk [vmem:[%s220 + $0xb0] sm:$0xff] %vm606, %v1090
        %1123 = vst.msk [vmem:[%s220 + $0xb8] sm:$0xff] %vm606, %v1091
        %1124 = vst.msk [vmem:[%s220 + $0xc0] sm:$0xff] %vm606, %v1092
        %1125 = vst.msk [vmem:[%s220 + $0xc8] sm:$0xff] %vm606, %v1093
        %1126 = vst.msk [vmem:[%s220 + $0xd0] sm:$0xff] %vm606, %v1094
        %1127 = vst.msk [vmem:[%s220 + $0xd8] sm:$0xff] %vm606, %v1095
        %1128 = vst.msk [vmem:[%s220 + $0xe0] sm:$0xff] %vm606, %v1096
        %1129 = vst.msk [vmem:[%s220 + $0xe8] sm:$0xff] %vm606, %v1097
        %1130 = vst.msk [vmem:[%s220 + $0xf0] sm:$0xff] %vm606, %v1098
        %1131 = vst.msk [vmem:[%s220 + $0xf8] sm:$0xff] %vm606, %v1099
        %s1132 = sand.u32 %s123, 1
        %s1133 = scalar_lea.sflag [#allocation4], %s1132
        %s1134 = sand.u32 %s123, 1
        %s1135 = smul.addr %s1134, 256
        %s1136 = scalar_lea.vmem [#allocation5], %s1135
        // Predicated region
        $region37: #{tpu_custom_call.1} parent=31 // pred_check
          %p1137 = pneg %p133
        $region38: #{tpu_custom_call.1} parent=31 // pred_check_branch
          %1139 = sbr.rel (%p1137) target = $region40
        $region39: #{tpu_custom_call.1} parent=31 // pred_region
          %s1140 = smul.u32 16, %s26
          %s1141 = smul.u32 2, %s27
          %s1143 = ssub.s32 4096, 4096
          %1144 = vsyncadd %s1133, %s1143
          %s1145 = smul.addr %s1140, 2
          %s1146 = sadd.s32 %s1141, %s1145
          %s1147 = smul.addr %s25, 32
          %s1148 = sadd.s32 %s1146, %s1147
          %s1149 = smul.addr %s1148, 128
          %s1150 = scalar_lea.hbm %s3, %s1149
          %s1151 = sshll.u32 %s1136, 4
          %s1152 = int_to_ptr.vmem [resolvable:$true] %s1151
          %1157 = dma.vmem_to_hbm [thread:$0]  %s1152, 4096, %s1150, %s1133, 128, 128, 8
        $region40: #{tpu_custom_call.1} parent=31 // pred_fallthru
          _
      $region32: #{tpu_custom_call.1} parent=5 // pred_fallthru
        _
      %p1158 = scmp.le.s32.totalorder 2, %s15
      // Predicated region
      $region41: #{tpu_custom_call.1} parent=5 // pred_check
        %p1159 = pneg %p1158
      $region42: #{tpu_custom_call.1} parent=5 // pred_check_branch
        %1161 = sbr.rel (%p1159) target = $region44
      $region43: #{tpu_custom_call.1} parent=5 // pred_region
        %s1162 = ssub.s32 %s15, 2
        // Predicated region
        $region45: #{tpu_custom_call.1} parent=43 // pred_check
          %p1163 = pneg %p139
        $region46: #{tpu_custom_call.1} parent=43 // pred_check_branch
          %1165 = sbr.rel (%p1163) target = $region48
        $region47: #{tpu_custom_call.1} parent=43 // pred_region
          %s1166 = sand.u32 %s124, 1
          %s1167 = scalar_lea.sflag [#allocation4], %s1166
          %s1168 = sand.u32 %s124, 1
          %s1169 = smul.addr %s1168, 256
          %s1170 = scalar_lea.vmem [#allocation5], %s1169
          %1171 = dma.done %s1167, 4096
        $region48: #{tpu_custom_call.1} parent=43 // pred_fallthru
          _
      $region44: #{tpu_custom_call.1} parent=5 // pred_fallthru
        _
    $region6: #{tpu_custom_call.1} parent=1 // loop_footer
      %s19 = sadd.s32 1, %s15
    $region7: #{tpu_custom_call.1} parent=1 // loop_footer_branch
      %14 = sbr.rel target = $region3
    $region8: #{tpu_custom_call.1} parent=1 // loop_exit
      _
    %1172 = vsyncpa [#allocation3], 1
    %s1173 = scalar_lea.sflag [#allocation3], 1
    %1174 = vsyncpa %s1173, 1
    %1175 = vsyncpa [#allocation4], 1
    %s1176 = scalar_lea.sflag [#allocation4], 1
    %1177 = vsyncpa %s1176, 1

</llo_original>
